<compile_context>
chip_gen: v6e
topology: v6e:2x2x1
jax: 0.10.0
libtpu: 0.0.40
codegen_flags: <defaults>
</compile_context>

<pallas_src>
import math
import functools

import jax
import jax.numpy as jnp
import numpy as np
from jax import lax
from jax.experimental import pallas as pl
from jax.experimental.pallas import tpu as pltpu

_MASK_VALUE = -1e30  # finite large-negative; exp(MASK - m) underflows to exact 0


# ----------------------------- fused Pallas kernel --------------------------

def _mha_kernel(q_ref, k_ref, v_ref, wq_ref, wk_ref, wv_ref, wo_ref, o_ref, *,
                nheads, size_seq, seq_len, compute_dtype, softmax_approx,
                mask_tail):
    """One (batch-block, chunk-block) tile: QKV projections + block-local causal
    attention over all (batch, chunk) groups + Wo projection, all in VMEM."""
    bblk, blk_len, dmodel = q_ref.shape
    dk = dmodel // nheads
    n_grp = bblk * (blk_len // size_seq)     # (batch, chunk) attention groups
    m_rows = bblk * blk_len                  # projection rows (big MXU M)

    dn_nt = (((1,), (1,)), ((), ()))         # x @ W.T with W in (out, in) layout

    def proj(x, w_ref):
        return lax.dot_general(x, w_ref[...], dn_nt,
                               preferred_element_type=jnp.float32)

    # Padded Q rows only produce output rows discarded at the block boundary,
    # padded K columns are excluded by the causal mask -> no masking needed.
    xq = q_ref[...].reshape(m_rows, dmodel).astype(compute_dtype)
    xk = k_ref[...].reshape(m_rows, dmodel).astype(compute_dtype)

    xv = v_ref[...]
    if mask_tail:
        # Zero only the ragged-tail V rows: attn weights there are exact zeros,
        # but 0 * uninitialized-garbage would otherwise poison attn @ V.
        pos = (pl.program_id(1) * blk_len
               + lax.broadcasted_iota(jnp.int32, xv.shape, 1))
        xv = jnp.where(pos < seq_len, xv, 0.0)
    xv = xv.reshape(m_rows, dmodel).astype(compute_dtype)

    # Projections; 1/sqrt(dk) is pre-folded into Wq, weights pre-cast.
    q = proj(xq, wq_ref).astype(compute_dtype).reshape(n_grp, size_seq, dmodel)
    k = proj(xk, wk_ref).astype(compute_dtype).reshape(n_grp, size_seq, dmodel)
    v = proj(xv, wv_ref).astype(compute_dtype).reshape(n_grp, size_seq, dmodel)

    # Block-local causal mask, hoisted out of the head loop (computed once).
    row = lax.broadcasted_iota(jnp.int32, (n_grp, size_seq, size_seq), 1)
    col = lax.broadcasted_iota(jnp.int32, (n_grp, size_seq, size_seq), 2)
    causal = col <= row

    wo_all = wo_ref[...]                     # load once, slice per head
    acc = None                               # (m_rows, dmodel) f32 accumulator
    for h in range(nheads):                  # static unroll; slices = address math
        lo = h * dk
        qh = q[:, :, lo:lo + dk]
        kh = k[:, :, lo:lo + dk]
        vh = v[:, :, lo:lo + dk]

        # (G, S, S) scores with f32 accumulation, batched over all groups.
        s = jnp.einsum('gqd,gkd->gqk', qh, kh,
                       preferred_element_type=jnp.float32)
        s = jnp.where(causal, s, _MASK_VALUE)
        m = jnp.max(s, axis=-1, keepdims=True)
        p = jnp.exp(s - m)                   # masked cols underflow to exact 0
        denom = jnp.sum(p, axis=-1, keepdims=True)
        attn = (p * pl.reciprocal(denom, approx=softmax_approx)).astype(compute_dtype)
        # dropout(p=0) is the identity.

        yh = jnp.einsum('gqk,gkd->gqd', attn, vh,
                        preferred_element_type=jnp.float32)
        # Per-head slice of the Wo contraction, accumulated in f32 (no concat).
        contrib = lax.dot_general(
            yh.reshape(m_rows, dk).astype(compute_dtype),
            wo_all[:, lo:lo + dk], dn_nt,
            preferred_element_type=jnp.float32)
        acc = contrib if acc is None else acc + contrib

    o_ref[...] = acc.reshape(bblk, blk_len, dmodel).astype(o_ref.dtype)


# ----------------------------- wrapper ---------------------------------------

def multi_head_attention(Q, K, V, params, size_seq, nheads,
                         compute_dtype=jnp.float32,
                         block_batch=None, block_chunks=None,
                         target_rows=256):
    """Fused MHA forward. Q/K/V: (bsz, bptt, dmodel) float32; weights in PyTorch
    (out_features, in_features) layout."""
    bsz, bptt, dmodel = Q.shape
    dk = dmodel // nheads
    n_chunks = pl.cdiv(bptt, size_seq)

    # --- block sizing: pack many (batch, chunk) tiles per grid step ----------
    if block_chunks is None:
        block_chunks = max(1, min(n_chunks, target_rows // size_seq))
    if block_batch is None:
        rows_per_batch = block_chunks * size_seq
        block_batch = max(1, min(bsz, max(1, target_rows // rows_per_batch)))
    grid_b = pl.cdiv(bsz, block_batch)
    grid_c = pl.cdiv(n_chunks, block_chunks)
    # v7x has 2 TensorCores: keep >=2 parallel steps when the problem has them.
    while grid_b * grid_c < 2 and block_batch * block_chunks > 1:
        if block_batch > 1:
            block_batch = (block_batch + 1) // 2
        else:
            block_chunks = (block_chunks + 1) // 2
        grid_b = pl.cdiv(bsz, block_batch)
        grid_c = pl.cdiv(n_chunks, block_chunks)

    blk_len = block_chunks * size_seq
    mask_tail = grid_c * blk_len > bptt      # block can read past bptt?

    # --- one-time weight prep (outside the kernel): fold 1/sqrt(dk) into Wq,
    # pre-cast everything to compute_dtype. -----------------------------------
    scale = 1.0 / math.sqrt(dk)
    wq = (params["Wq"] * scale).astype(compute_dtype)
    wk = params["Wk"].astype(compute_dtype)
    wv = params["Wv"].astype(compute_dtype)
    wo = params["Wo"].astype(compute_dtype)

    softmax_approx = jnp.dtype(compute_dtype) != jnp.dtype(jnp.float32)

    kern = functools.partial(
        _mha_kernel, nheads=nheads, size_seq=size_seq, seq_len=bptt,
        compute_dtype=compute_dtype, softmax_approx=softmax_approx,
        mask_tail=mask_tail)

    x_spec = pl.BlockSpec((block_batch, blk_len, dmodel), lambda b, c: (b, c, 0))
    w_spec = pl.BlockSpec((dmodel, dmodel), lambda b, c: (0, 0))

    # --- advisory cost estimate + explicit VMEM budget ------------------------
    rows = bsz * bptt
    cd_size = jnp.dtype(compute_dtype).itemsize
    flops = (4 * 2 * rows * dmodel * dmodel
             + 2 * 2 * bsz * n_chunks * size_seq * size_seq * dmodel)
    transcendentals = bsz * n_chunks * nheads * size_seq * size_seq
    bytes_accessed = 4 * rows * dmodel * 4 + 4 * dmodel * dmodel * cd_size
    cost = pl.CostEstimate(flops=int(flops),
                           transcendentals=int(transcendentals),
                           bytes_accessed=int(bytes_accessed))

    m_rows = block_batch * blk_len
    n_grp = block_batch * block_chunks
    act_blk = block_batch * blk_len * dmodel * 4
    budget = (4 * act_blk * 2                        # 3 in + 1 out, double-buffered
              + 4 * dmodel * dmodel * cd_size * 2    # 4 weights (worst case 2x)
              + 3 * m_rows * dmodel * (4 + cd_size)  # q/k/v proj + compute copies
              + 3 * n_grp * size_seq * size_seq * 4  # score/prob temporaries
              + m_rows * dmodel * 4)                 # f32 output accumulator
    vmem_limit = int(min(64 * 1024 * 1024, max(32 * 1024 * 1024, 2 * budget)))

    return pl.pallas_call(
        kern,
        out_shape=jax.ShapeDtypeStruct((bsz, bptt, dmodel), jnp.float32),
        grid=(grid_b, grid_c),
        in_specs=[x_spec, x_spec, x_spec, w_spec, w_spec, w_spec, w_spec],
        out_specs=x_spec,
        compiler_params=pltpu.CompilerParams(
            dimension_semantics=("parallel", "parallel"),
            vmem_limit_bytes=vmem_limit),
        cost_estimate=cost,
    )(Q, K, V, wq, wk, wv, wo)


# ----------------------------- reference (pure jnp) --------------------------

def _reference(Q, K, V, params, size_seq, nheads):
    bsz, bptt, dmodel = Q.shape
    dk = dmodel // nheads

    def lin(x, w):
        return x @ w.T

    def trans_(x):
        return (x.reshape(bsz, bptt, nheads, dk)
                 .transpose(0, 2, 1, 3)
                 .reshape(bsz * nheads, bptt, dk))

    def prepare(x):
        n, s, kd = x.shape
        r = s % size_seq
        if r > 0:
            x = jnp.concatenate(
                [x, jnp.zeros((n, size_seq - r, kd), x.dtype)], axis=1)
            s += size_seq - r
        return x.reshape(n * (s // size_seq), size_seq, kd)

    q = prepare(trans_(lin(Q, params["Wq"])))
    k = prepare(trans_(lin(K, params["Wk"])))
    v = prepare(trans_(lin(V, params["Wv"])))

    scores = jnp.einsum("bik,bjk->bij", q, k) / math.sqrt(dk)
    mask = jnp.where(jnp.tril(jnp.ones((size_seq, size_seq))) == 1, 0.0, -jnp.inf)
    attn = jax.nn.softmax(scores + mask[None], axis=-1)
    out = jnp.einsum("bij,bjk->bik", attn, v)

    out = out.reshape(bsz * nheads, -1, dk)[:, :bptt]
    out = (out.reshape(bsz, nheads, bptt, dk)
              .transpose(0, 2, 1, 3)
              .reshape(bsz, bptt, dmodel))
    return lin(out, params["Wo"])


# ----------------------------- main ------------------------------------------

if __name__ == "__main__":
    dmodel, nheads = 32, 4

    key = jax.random.PRNGKey(0)
    wkeys = jax.random.split(key, 4)
    stdv = 1.0 / math.sqrt(dmodel)
    params = {
        name: jax.random.uniform(wkeys[i], (dmodel, dmodel), jnp.float32,
                                 -stdv, stdv)
        for i, name in enumerate(["Wq", "Wk", "Wv", "Wo"])
    }

    def run_case(seed, bsz, bptt, size_seq, compute_dtype, rtol, atol):
        kq, kk, kv = jax.random.split(jax.random.fold_in(key, seed), 3)
        Q = jax.random.normal(kq, (bsz, bptt, dmodel), jnp.float32)
        K = jax.random.normal(kk, (bsz, bptt, dmodel), jnp.float32)
        V = jax.random.normal(kv, (bsz, bptt, dmodel), jnp.float32)

        out = multi_head_attention(Q, K, V, params, size_seq, nheads,
                                   compute_dtype=compute_dtype)
        out = jax.block_until_ready(out)
        ref = _reference(Q, K, V, params, size_seq, nheads)
        np.testing.assert_allclose(np.asarray(out), np.asarray(ref),
                                   rtol=rtol, atol=atol)

    # 1) bptt == sizeSeq, f32 compute, exact reciprocal (tight check).
    run_case(0, bsz=2, bptt=8, size_seq=8, compute_dtype=jnp.float32,
             rtol=1e-2, atol=1e-2)
    # 2) bf16 MXU operands with f32 accumulation (v6e/v7x throughput path).
    run_case(1, bsz=2, bptt=8, size_seq=8, compute_dtype=jnp.bfloat16,
             rtol=1e-1, atol=1e-1)
    # 3) ragged tail (bptt % sizeSeq != 0): multi-chunk block with in-kernel
    #    V-only tail masking replaces the host-side zero-pad concatenate.
    run_case(2, bsz=2, bptt=12, size_seq=8, compute_dtype=jnp.float32,
             rtol=1e-2, atol=1e-2)
    # 4) many chunks packed into one block (G = 4 groups per grid step).
    run_case(3, bsz=2, bptt=32, size_seq=8, compute_dtype=jnp.float32,
             rtol=1e-2, atol=1e-2)

    print("KERNEL_OK")
</pallas_src>

<mosaic_0001>
module attributes {stable_mosaic.version = 11 : i64} {
  func.func @_mha_kernel(%arg0: i32, %arg1: i32, %arg2: memref<1x8x32xf32, #tpu.memory_space<vmem>>, %arg3: memref<1x8x32xf32, #tpu.memory_space<vmem>>, %arg4: memref<1x8x32xf32, #tpu.memory_space<vmem>>, %arg5: memref<32x32xf32, #tpu.memory_space<vmem>>, %arg6: memref<32x32xf32, #tpu.memory_space<vmem>>, %arg7: memref<32x32xf32, #tpu.memory_space<vmem>>, %arg8: memref<32x32xf32, #tpu.memory_space<vmem>>, %arg9: memref<1x8x32xf32, #tpu.memory_space<vmem>>) attributes {dimension_semantics = [#tpu.dimension_semantics<parallel>, #tpu.dimension_semantics<parallel>], iteration_bounds = array<i64: 2, 1>, scalar_prefetch = 0 : i64, scratch_operands = 0 : i64, tpu.core_type = #tpu.core_type<tc>, window_params = [{transform_indices = @transform_0, window_bounds = array<i64: 1, 8, 32>}, {transform_indices = @transform_1, window_bounds = array<i64: 1, 8, 32>}, {transform_indices = @transform_2, window_bounds = array<i64: 1, 8, 32>}, {pipeline_mode = #tpu.pipeline_mode<synchronous>, transform_indices = @transform_3, window_bounds = array<i64: 32, 32>}, {pipeline_mode = #tpu.pipeline_mode<synchronous>, transform_indices = @transform_4, window_bounds = array<i64: 32, 32>}, {pipeline_mode = #tpu.pipeline_mode<synchronous>, transform_indices = @transform_5, window_bounds = array<i64: 32, 32>}, {pipeline_mode = #tpu.pipeline_mode<synchronous>, transform_indices = @transform_6, window_bounds = array<i64: 32, 32>}, {transform_indices = @transform_7, window_bounds = array<i64: 1, 8, 32>}]} {
    %c0 = arith.constant 0 : index
    %c0_0 = arith.constant 0 : index
    %c0_1 = arith.constant 0 : index
    %0 = vector.load %arg2[%c0, %c0_0, %c0_1] : memref<1x8x32xf32, #tpu.memory_space<vmem>>, vector<1x8x32xf32>
    %1 = vector.shape_cast %0 : vector<1x8x32xf32> to vector<8x32xf32>
    %c0_2 = arith.constant 0 : index
    %c0_3 = arith.constant 0 : index
    %c0_4 = arith.constant 0 : index
    %2 = vector.load %arg3[%c0_2, %c0_3, %c0_4] : memref<1x8x32xf32, #tpu.memory_space<vmem>>, vector<1x8x32xf32>
    %3 = vector.shape_cast %2 : vector<1x8x32xf32> to vector<8x32xf32>
    %c0_5 = arith.constant 0 : index
    %c0_6 = arith.constant 0 : index
    %c0_7 = arith.constant 0 : index
    %4 = vector.load %arg4[%c0_5, %c0_6, %c0_7] : memref<1x8x32xf32, #tpu.memory_space<vmem>>, vector<1x8x32xf32>
    %5 = vector.shape_cast %4 : vector<1x8x32xf32> to vector<8x32xf32>
    %c0_8 = arith.constant 0 : index
    %c0_9 = arith.constant 0 : index
    %6 = vector.load %arg5[%c0_8, %c0_9] : memref<32x32xf32, #tpu.memory_space<vmem>>, vector<32x32xf32>
    %cst = arith.constant dense<0.000000e+00> : vector<8x32xf32>
    %7 = tpu.matmul %1, %6, %cst {dimension_numbers = #tpu.dot_dimension_numbers<[1], [1], [0], [0], [0, 0, 1, 0], [], []>} : vector<8x32xf32>, vector<32x32xf32>, vector<8x32xf32> -> vector<8x32xf32>
    %8 = vector.shape_cast %7 : vector<8x32xf32> to vector<1x8x32xf32>
    %c0_10 = arith.constant 0 : index
    %c0_11 = arith.constant 0 : index
    %9 = vector.load %arg6[%c0_10, %c0_11] : memref<32x32xf32, #tpu.memory_space<vmem>>, vector<32x32xf32>
    %cst_12 = arith.constant dense<0.000000e+00> : vector<8x32xf32>
    %10 = tpu.matmul %3, %9, %cst_12 {dimension_numbers = #tpu.dot_dimension_numbers<[1], [1], [0], [0], [0, 0, 1, 0], [], []>} : vector<8x32xf32>, vector<32x32xf32>, vector<8x32xf32> -> vector<8x32xf32>
    %11 = vector.shape_cast %10 : vector<8x32xf32> to vector<1x8x32xf32>
    %c0_13 = arith.constant 0 : index
    %c0_14 = arith.constant 0 : index
    %12 = vector.load %arg7[%c0_13, %c0_14] : memref<32x32xf32, #tpu.memory_space<vmem>>, vector<32x32xf32>
    %cst_15 = arith.constant dense<0.000000e+00> : vector<8x32xf32>
    %13 = tpu.matmul %5, %12, %cst_15 {dimension_numbers = #tpu.dot_dimension_numbers<[1], [1], [0], [0], [0, 0, 1, 0], [], []>} : vector<8x32xf32>, vector<32x32xf32>, vector<8x32xf32> -> vector<8x32xf32>
    %14 = vector.shape_cast %13 : vector<8x32xf32> to vector<1x8x32xf32>
    %15 = tpu.iota {dimensions = array<i32: 1>} : vector<1x8x8xi32>
    %16 = tpu.iota {dimensions = array<i32: 2>} : vector<1x8x8xi32>
    %17 = arith.cmpi sle, %16, %15 : vector<1x8x8xi32>
    %c0_16 = arith.constant 0 : index
    %c0_17 = arith.constant 0 : index
    %18 = vector.load %arg8[%c0_16, %c0_17] : memref<32x32xf32, #tpu.memory_space<vmem>>, vector<32x32xf32>
    %19 = vector.extract_strided_slice %8 {offsets = [0, 0, 0], sizes = [1, 8, 8], strides = [1, 1, 1]} : vector<1x8x32xf32> to vector<1x8x8xf32>
    %20 = vector.extract_strided_slice %11 {offsets = [0, 0, 0], sizes = [1, 8, 8], strides = [1, 1, 1]} : vector<1x8x32xf32> to vector<1x8x8xf32>
    %21 = vector.extract_strided_slice %14 {offsets = [0, 0, 0], sizes = [1, 8, 8], strides = [1, 1, 1]} : vector<1x8x32xf32> to vector<1x8x8xf32>
    "tpu.trace_start"() <{level = 10 : i32, message = "gqd,gkd->gqk"}> : () -> ()
    %cst_18 = arith.constant dense<0.000000e+00> : vector<1x8x8xf32>
    %22 = tpu.matmul %19, %20, %cst_18 {dimension_numbers = #tpu.dot_dimension_numbers<[2], [2], [1], [1], [0, 0, 0, 1, 1, 1], [0], [0]>} : vector<1x8x8xf32>, vector<1x8x8xf32>, vector<1x8x8xf32> -> vector<1x8x8xf32>
    %cst_19 = arith.constant -1.000000e+30 : f32
    "tpu.trace_stop"() : () -> ()
    %23 = vector.broadcast %cst_19 : f32 to vector<1x8x8xf32>
    %24 = arith.select %17, %22, %23 : vector<1x8x8xi1>, vector<1x8x8xf32>
    %cst_20 = arith.constant dense<0xFF800000> : vector<1x8xf32>
    %25 = vector.multi_reduction <maximumf>, %24, %cst_20 [2] : vector<1x8x8xf32> to vector<1x8xf32>
    %26 = vector.shape_cast %25 : vector<1x8xf32> to vector<1x8x1xf32>
    %27 = vector.broadcast %26 : vector<1x8x1xf32> to vector<1x8x8xf32>
    %28 = arith.subf %24, %27 : vector<1x8x8xf32>
    %29 = math.exp %28 : vector<1x8x8xf32>
    %cst_21 = arith.constant dense<0.000000e+00> : vector<1x8xf32>
    %30 = vector.multi_reduction <add>, %29, %cst_21 [2] : vector<1x8x8xf32> to vector<1x8xf32>
    %31 = vector.shape_cast %30 : vector<1x8xf32> to vector<1x8x1xf32>
    %32 = tpu.reciprocal %31 : vector<1x8x1xf32> -> vector<1x8x1xf32>
    %33 = vector.broadcast %32 : vector<1x8x1xf32> to vector<1x8x8xf32>
    %34 = arith.mulf %29, %33 : vector<1x8x8xf32>
    "tpu.trace_start"() <{level = 10 : i32, message = "gqk,gkd->gqd"}> : () -> ()
    %cst_22 = arith.constant dense<0.000000e+00> : vector<1x8x8xf32>
    %35 = tpu.matmul %34, %21, %cst_22 {dimension_numbers = #tpu.dot_dimension_numbers<[2], [1], [1], [2], [0, 0, 0, 1, 1, 2], [0], [0]>} : vector<1x8x8xf32>, vector<1x8x8xf32>, vector<1x8x8xf32> -> vector<1x8x8xf32>
    "tpu.trace_stop"() : () -> ()
    %36 = vector.shape_cast %35 : vector<1x8x8xf32> to vector<8x8xf32>
    %37 = vector.extract_strided_slice %18 {offsets = [0, 0], sizes = [32, 8], strides = [1, 1]} : vector<32x32xf32> to vector<32x8xf32>
    %cst_23 = arith.constant dense<0.000000e+00> : vector<8x32xf32>
    %38 = tpu.matmul %36, %37, %cst_23 {dimension_numbers = #tpu.dot_dimension_numbers<[1], [1], [0], [0], [0, 0, 1, 0], [], []>} : vector<8x8xf32>, vector<32x8xf32>, vector<8x32xf32> -> vector<8x32xf32>
    %39 = vector.extract_strided_slice %8 {offsets = [0, 0, 8], sizes = [1, 8, 8], strides = [1, 1, 1]} : vector<1x8x32xf32> to vector<1x8x8xf32>
    %40 = vector.extract_strided_slice %11 {offsets = [0, 0, 8], sizes = [1, 8, 8], strides = [1, 1, 1]} : vector<1x8x32xf32> to vector<1x8x8xf32>
    %41 = vector.extract_strided_slice %14 {offsets = [0, 0, 8], sizes = [1, 8, 8], strides = [1, 1, 1]} : vector<1x8x32xf32> to vector<1x8x8xf32>
    "tpu.trace_start"() <{level = 10 : i32, message = "gqd,gkd->gqk"}> : () -> ()
    %cst_24 = arith.constant dense<0.000000e+00> : vector<1x8x8xf32>
    %42 = tpu.matmul %39, %40, %cst_24 {dimension_numbers = #tpu.dot_dimension_numbers<[2], [2], [1], [1], [0, 0, 0, 1, 1, 1], [0], [0]>} : vector<1x8x8xf32>, vector<1x8x8xf32>, vector<1x8x8xf32> -> vector<1x8x8xf32>
    %cst_25 = arith.constant -1.000000e+30 : f32
    "tpu.trace_stop"() : () -> ()
    %43 = vector.broadcast %cst_25 : f32 to vector<1x8x8xf32>
    %44 = arith.select %17, %42, %43 : vector<1x8x8xi1>, vector<1x8x8xf32>
    %cst_26 = arith.constant dense<0xFF800000> : vector<1x8xf32>
    %45 = vector.multi_reduction <maximumf>, %44, %cst_26 [2] : vector<1x8x8xf32> to vector<1x8xf32>
    %46 = vector.shape_cast %45 : vector<1x8xf32> to vector<1x8x1xf32>
    %47 = vector.broadcast %46 : vector<1x8x1xf32> to vector<1x8x8xf32>
    %48 = arith.subf %44, %47 : vector<1x8x8xf32>
    %49 = math.exp %48 : vector<1x8x8xf32>
    %cst_27 = arith.constant dense<0.000000e+00> : vector<1x8xf32>
    %50 = vector.multi_reduction <add>, %49, %cst_27 [2] : vector<1x8x8xf32> to vector<1x8xf32>
    %51 = vector.shape_cast %50 : vector<1x8xf32> to vector<1x8x1xf32>
    %52 = tpu.reciprocal %51 : vector<1x8x1xf32> -> vector<1x8x1xf32>
    %53 = vector.broadcast %52 : vector<1x8x1xf32> to vector<1x8x8xf32>
    %54 = arith.mulf %49, %53 : vector<1x8x8xf32>
    "tpu.trace_start"() <{level = 10 : i32, message = "gqk,gkd->gqd"}> : () -> ()
    %cst_28 = arith.constant dense<0.000000e+00> : vector<1x8x8xf32>
    %55 = tpu.matmul %54, %41, %cst_28 {dimension_numbers = #tpu.dot_dimension_numbers<[2], [1], [1], [2], [0, 0, 0, 1, 1, 2], [0], [0]>} : vector<1x8x8xf32>, vector<1x8x8xf32>, vector<1x8x8xf32> -> vector<1x8x8xf32>
    "tpu.trace_stop"() : () -> ()
    %56 = vector.shape_cast %55 : vector<1x8x8xf32> to vector<8x8xf32>
    %57 = vector.extract_strided_slice %18 {offsets = [0, 8], sizes = [32, 8], strides = [1, 1]} : vector<32x32xf32> to vector<32x8xf32>
    %cst_29 = arith.constant dense<0.000000e+00> : vector<8x32xf32>
    %58 = tpu.matmul %56, %57, %cst_29 {dimension_numbers = #tpu.dot_dimension_numbers<[1], [1], [0], [0], [0, 0, 1, 0], [], []>} : vector<8x8xf32>, vector<32x8xf32>, vector<8x32xf32> -> vector<8x32xf32>
    %59 = arith.addf %38, %58 : vector<8x32xf32>
    %60 = vector.extract_strided_slice %8 {offsets = [0, 0, 16], sizes = [1, 8, 8], strides = [1, 1, 1]} : vector<1x8x32xf32> to vector<1x8x8xf32>
    %61 = vector.extract_strided_slice %11 {offsets = [0, 0, 16], sizes = [1, 8, 8], strides = [1, 1, 1]} : vector<1x8x32xf32> to vector<1x8x8xf32>
    %62 = vector.extract_strided_slice %14 {offsets = [0, 0, 16], sizes = [1, 8, 8], strides = [1, 1, 1]} : vector<1x8x32xf32> to vector<1x8x8xf32>
    "tpu.trace_start"() <{level = 10 : i32, message = "gqd,gkd->gqk"}> : () -> ()
    %cst_30 = arith.constant dense<0.000000e+00> : vector<1x8x8xf32>
    %63 = tpu.matmul %60, %61, %cst_30 {dimension_numbers = #tpu.dot_dimension_numbers<[2], [2], [1], [1], [0, 0, 0, 1, 1, 1], [0], [0]>} : vector<1x8x8xf32>, vector<1x8x8xf32>, vector<1x8x8xf32> -> vector<1x8x8xf32>
    %cst_31 = arith.constant -1.000000e+30 : f32
    "tpu.trace_stop"() : () -> ()
    %64 = vector.broadcast %cst_31 : f32 to vector<1x8x8xf32>
    %65 = arith.select %17, %63, %64 : vector<1x8x8xi1>, vector<1x8x8xf32>
    %cst_32 = arith.constant dense<0xFF800000> : vector<1x8xf32>
    %66 = vector.multi_reduction <maximumf>, %65, %cst_32 [2] : vector<1x8x8xf32> to vector<1x8xf32>
    %67 = vector.shape_cast %66 : vector<1x8xf32> to vector<1x8x1xf32>
    %68 = vector.broadcast %67 : vector<1x8x1xf32> to vector<1x8x8xf32>
    %69 = arith.subf %65, %68 : vector<1x8x8xf32>
    %70 = math.exp %69 : vector<1x8x8xf32>
    %cst_33 = arith.constant dense<0.000000e+00> : vector<1x8xf32>
    %71 = vector.multi_reduction <add>, %70, %cst_33 [2] : vector<1x8x8xf32> to vector<1x8xf32>
    %72 = vector.shape_cast %71 : vector<1x8xf32> to vector<1x8x1xf32>
    %73 = tpu.reciprocal %72 : vector<1x8x1xf32> -> vector<1x8x1xf32>
    %74 = vector.broadcast %73 : vector<1x8x1xf32> to vector<1x8x8xf32>
    %75 = arith.mulf %70, %74 : vector<1x8x8xf32>
    "tpu.trace_start"() <{level = 10 : i32, message = "gqk,gkd->gqd"}> : () -> ()
    %cst_34 = arith.constant dense<0.000000e+00> : vector<1x8x8xf32>
    %76 = tpu.matmul %75, %62, %cst_34 {dimension_numbers = #tpu.dot_dimension_numbers<[2], [1], [1], [2], [0, 0, 0, 1, 1, 2], [0], [0]>} : vector<1x8x8xf32>, vector<1x8x8xf32>, vector<1x8x8xf32> -> vector<1x8x8xf32>
    "tpu.trace_stop"() : () -> ()
    %77 = vector.shape_cast %76 : vector<1x8x8xf32> to vector<8x8xf32>
    %78 = vector.extract_strided_slice %18 {offsets = [0, 16], sizes = [32, 8], strides = [1, 1]} : vector<32x32xf32> to vector<32x8xf32>
    %cst_35 = arith.constant dense<0.000000e+00> : vector<8x32xf32>
    %79 = tpu.matmul %77, %78, %cst_35 {dimension_numbers = #tpu.dot_dimension_numbers<[1], [1], [0], [0], [0, 0, 1, 0], [], []>} : vector<8x8xf32>, vector<32x8xf32>, vector<8x32xf32> -> vector<8x32xf32>
    %80 = arith.addf %59, %79 : vector<8x32xf32>
    %81 = vector.extract_strided_slice %8 {offsets = [0, 0, 24], sizes = [1, 8, 8], strides = [1, 1, 1]} : vector<1x8x32xf32> to vector<1x8x8xf32>
    %82 = vector.extract_strided_slice %11 {offsets = [0, 0, 24], sizes = [1, 8, 8], strides = [1, 1, 1]} : vector<1x8x32xf32> to vector<1x8x8xf32>
    %83 = vector.extract_strided_slice %14 {offsets = [0, 0, 24], sizes = [1, 8, 8], strides = [1, 1, 1]} : vector<1x8x32xf32> to vector<1x8x8xf32>
    "tpu.trace_start"() <{level = 10 : i32, message = "gqd,gkd->gqk"}> : () -> ()
    %cst_36 = arith.constant dense<0.000000e+00> : vector<1x8x8xf32>
    %84 = tpu.matmul %81, %82, %cst_36 {dimension_numbers = #tpu.dot_dimension_numbers<[2], [2], [1], [1], [0, 0, 0, 1, 1, 1], [0], [0]>} : vector<1x8x8xf32>, vector<1x8x8xf32>, vector<1x8x8xf32> -> vector<1x8x8xf32>
    %cst_37 = arith.constant -1.000000e+30 : f32
    "tpu.trace_stop"() : () -> ()
    %85 = vector.broadcast %cst_37 : f32 to vector<1x8x8xf32>
    %86 = arith.select %17, %84, %85 : vector<1x8x8xi1>, vector<1x8x8xf32>
    %cst_38 = arith.constant dense<0xFF800000> : vector<1x8xf32>
    %87 = vector.multi_reduction <maximumf>, %86, %cst_38 [2] : vector<1x8x8xf32> to vector<1x8xf32>
    %88 = vector.shape_cast %87 : vector<1x8xf32> to vector<1x8x1xf32>
    %89 = vector.broadcast %88 : vector<1x8x1xf32> to vector<1x8x8xf32>
    %90 = arith.subf %86, %89 : vector<1x8x8xf32>
    %91 = math.exp %90 : vector<1x8x8xf32>
    %cst_39 = arith.constant dense<0.000000e+00> : vector<1x8xf32>
    %92 = vector.multi_reduction <add>, %91, %cst_39 [2] : vector<1x8x8xf32> to vector<1x8xf32>
    %93 = vector.shape_cast %92 : vector<1x8xf32> to vector<1x8x1xf32>
    %94 = tpu.reciprocal %93 : vector<1x8x1xf32> -> vector<1x8x1xf32>
    %95 = vector.broadcast %94 : vector<1x8x1xf32> to vector<1x8x8xf32>
    %96 = arith.mulf %91, %95 : vector<1x8x8xf32>
    "tpu.trace_start"() <{level = 10 : i32, message = "gqk,gkd->gqd"}> : () -> ()
    %cst_40 = arith.constant dense<0.000000e+00> : vector<1x8x8xf32>
    %97 = tpu.matmul %96, %83, %cst_40 {dimension_numbers = #tpu.dot_dimension_numbers<[2], [1], [1], [2], [0, 0, 0, 1, 1, 2], [0], [0]>} : vector<1x8x8xf32>, vector<1x8x8xf32>, vector<1x8x8xf32> -> vector<1x8x8xf32>
    "tpu.trace_stop"() : () -> ()
    %98 = vector.shape_cast %97 : vector<1x8x8xf32> to vector<8x8xf32>
    %99 = vector.extract_strided_slice %18 {offsets = [0, 24], sizes = [32, 8], strides = [1, 1]} : vector<32x32xf32> to vector<32x8xf32>
    %cst_41 = arith.constant dense<0.000000e+00> : vector<8x32xf32>
    %100 = tpu.matmul %98, %99, %cst_41 {dimension_numbers = #tpu.dot_dimension_numbers<[1], [1], [0], [0], [0, 0, 1, 0], [], []>} : vector<8x8xf32>, vector<32x8xf32>, vector<8x32xf32> -> vector<8x32xf32>
    %101 = arith.addf %80, %100 : vector<8x32xf32>
    %102 = vector.shape_cast %101 : vector<8x32xf32> to vector<1x8x32xf32>
    %c0_42 = arith.constant 0 : index
    %c0_43 = arith.constant 0 : index
    %c0_44 = arith.constant 0 : index
    %103 = vector.load %arg9[%c0_42, %c0_43, %c0_44] : memref<1x8x32xf32, #tpu.memory_space<vmem>>, vector<1x8x32xf32>
    tpu.vector_store %arg9[%c0_42, %c0_43, %c0_44], %102 {strides = array<i32>} : memref<1x8x32xf32, #tpu.memory_space<vmem>>, vector<1x8x32xf32>,
    return
  }
  func.func @transform_0(%arg0: i32, %arg1: i32) -> (i32, i32, i32) {
    %c0_i32 = arith.constant 0 : i32
    %c0_i32_0 = arith.constant 0 : i32
    return %arg0, %arg1, %c0_i32 : i32, i32, i32
  }
  func.func @transform_1(%arg0: i32, %arg1: i32) -> (i32, i32, i32) {
    %c0_i32 = arith.constant 0 : i32
    %c0_i32_0 = arith.constant 0 : i32
    return %arg0, %arg1, %c0_i32 : i32, i32, i32
  }
  func.func @transform_2(%arg0: i32, %arg1: i32) -> (i32, i32, i32) {
    %c0_i32 = arith.constant 0 : i32
    %c0_i32_0 = arith.constant 0 : i32
    return %arg0, %arg1, %c0_i32 : i32, i32, i32
  }
  func.func @transform_3(%arg0: i32, %arg1: i32) -> (i32, i32) {
    %c0_i32 = arith.constant 0 : i32
    %c0_i32_0 = arith.constant 0 : i32
    %c0_i32_1 = arith.constant 0 : i32
    return %c0_i32, %c0_i32_0 : i32, i32
  }
  func.func @transform_4(%arg0: i32, %arg1: i32) -> (i32, i32) {
    %c0_i32 = arith.constant 0 : i32
    %c0_i32_0 = arith.constant 0 : i32
    %c0_i32_1 = arith.constant 0 : i32
    return %c0_i32, %c0_i32_0 : i32, i32
  }
  func.func @transform_5(%arg0: i32, %arg1: i32) -> (i32, i32) {
    %c0_i32 = arith.constant 0 : i32
    %c0_i32_0 = arith.constant 0 : i32
    %c0_i32_1 = arith.constant 0 : i32
    return %c0_i32, %c0_i32_0 : i32, i32
  }
  func.func @transform_6(%arg0: i32, %arg1: i32) -> (i32, i32) {
    %c0_i32 = arith.constant 0 : i32
    %c0_i32_0 = arith.constant 0 : i32
    %c0_i32_1 = arith.constant 0 : i32
    return %c0_i32, %c0_i32_0 : i32, i32
  }
  func.func @transform_7(%arg0: i32, %arg1: i32) -> (i32, i32, i32) {
    %c0_i32 = arith.constant 0 : i32
    %c0_i32_0 = arith.constant 0 : i32
    return %arg0, %arg1, %c0_i32 : i32, i32, i32
  }
}

</mosaic_0001>

<llo_original>
// kernel: tpu_custom_call.1
$region0: #{tpu_custom_call.1}
  #allocation0 [shape = 'u32[]', space=smem, size = 0x4, offset = 0x4, fixed_abs, tag = 'smem constant byte address 0x4 - core index']
  #allocation1 [shape = 'u32[144,128]{1,0:T(1,128)}', space=vmem, size = 0x12000, scoped, tag = 'internal scratch']
  %s0 = inlined_call_operand.hbm [shape: f32[2,8,32], index: 0, kind: input, shape index: {}]
  %s1 = inlined_call_operand.hbm [shape: f32[2,8,32], index: 1, kind: input, shape index: {}]
  %s2 = inlined_call_operand.hbm [shape: f32[2,8,32], index: 2, kind: input, shape index: {}]
  %s3 = inlined_call_operand.hbm [shape: f32[32,32], index: 3, kind: input, shape index: {}]
  %s4 = inlined_call_operand.hbm [shape: f32[32,32], index: 4, kind: input, shape index: {}]
  %s5 = inlined_call_operand.hbm [shape: f32[32,32], index: 5, kind: input, shape index: {}]
  %s6 = inlined_call_operand.hbm [shape: f32[32,32], index: 6, kind: input, shape index: {}]
  %s7 = inlined_call_operand.hbm [shape: f32[2,8,32], index: 7, kind: output, shape index: {}]
  %s8 = sld [smem:[#allocation0]]
  $region89: #{tpu_custom_call.1} parent=0
    _
  %s10 = ssub.s32 1, %s8
  %s11 = scalar_select 0, %s10, %s8
  $region1: #{tpu_custom_call.1} parent=0
    #allocation2 [shape = 'u8[8192]{0}', space=vmem, size = 0x2000, scoped, tag = 'input window, operand 0']
    #allocation3 [shape = 's32[2]{0}', space=sflag, size = 0x8, scoped, tag = 'scoped memory for tpu_custom_call.1']
    #allocation4 [shape = 's32[2]{0}', space=sflag, size = 0x8, scoped, tag = 'scoped memory for tpu_custom_call.1']
    #allocation5 [shape = 'u8[8192]{0}', space=vmem, size = 0x2000, scoped, tag = 'input window, operand 1']
    #allocation6 [shape = 's32[2]{0}', space=sflag, size = 0x8, scoped, tag = 'scoped memory for tpu_custom_call.1']
    #allocation7 [shape = 'u8[8192]{0}', space=vmem, size = 0x2000, scoped, tag = 'input window, operand 2']
    #allocation8 [shape = 'u8[16384]{0}', space=vmem, size = 0x4000, scoped, tag = 'input window, operand 3, single buffered']
    #allocation9 [shape = 's32[1]{0}', space=sflag, size = 0x4, scoped, tag = 'scoped memory for tpu_custom_call.1']
    #allocation10 [shape = 'u8[16384]{0}', space=vmem, size = 0x4000, scoped, tag = 'input window, operand 4, single buffered']
    #allocation11 [shape = 'u8[16384]{0}', space=vmem, size = 0x4000, scoped, tag = 'input window, operand 5, single buffered']
    #allocation12 [shape = 's32[1]{0}', space=sflag, size = 0x4, scoped, tag = 'scoped memory for tpu_custom_call.1']
    #allocation13 [shape = 'u8[16384]{0}', space=vmem, size = 0x4000, scoped, tag = 'input window, operand 6, single buffered']
    #allocation14 [shape = 'u8[8192]{0}', space=vmem, size = 0x2000, scoped, tag = 'output window, operand 0']
    %12 = vsyncpa [#allocation3], 0
    %s13 = scalar_lea.sflag [#allocation3], 1
    %14 = vsyncpa %s13, 0
    %15 = vsyncpa [#allocation6], 0
    %s16 = scalar_lea.sflag [#allocation6], 1
    %17 = vsyncpa %s16, 0
    %18 = vsyncpa [#allocation9], 0
    %19 = vsyncpa [#allocation12], 0
    %20 = vsyncpa [#allocation4], 0
    %s21 = scalar_lea.sflag [#allocation4], 1
    %22 = vsyncpa %s21, 0
    loop: start=0, step=1, limit=4
    $region2: #{tpu_custom_call.1} parent=1 // loop_pre_header
      _
    $region3: #{tpu_custom_call.1} parent=1 // loop_header
      %s24 = sphi 0, %s28
      %p25 = scmp.ge.s32.totalorder %s24, 4
      %s31 = sphi 0, %s43
      %s32 = sphi 0, %s39
      %s33 = sphi 0, %s31
      %s34 = sphi 0, %s32
      %s35 = sphi 0, %s33
      %s36 = sphi 0, %s34
      %s48 = sphi 0, %s50
      %s51 = sphi 0, %s48
      %s52 = sphi 0, %s51
      %s68 = sphi 0, %s52
      %s76 = sphi 0, %s78
      %s79 = sphi 0, %s76
      %s80 = sphi 0, %s79
      %s96 = sphi 0, %s80
      %s104 = sphi 0, %s106
      %s107 = sphi 0, %s104
      %s108 = sphi 0, %s107
      %s124 = sphi 0, %s108
      %s128 = sphi 0, %s128
      %s130 = sphi 0, %s128
      %s131 = sphi 0, %s130
      %s145 = sphi 0, %s131
      %s149 = sphi 0, %s149
      %s151 = sphi 0, %s149
      %s152 = sphi 0, %s151
      %s166 = sphi 0, %s152
      %s170 = sphi 0, %s170
      %s172 = sphi 0, %s170
      %s173 = sphi 0, %s172
      %s187 = sphi 0, %s173
      %s191 = sphi 0, %s191
      %s193 = sphi 0, %s191
      %s194 = sphi 0, %s193
      %s208 = sphi 0, %s194
      %s216 = sphi 0, %s218
      %s219 = sphi 0, %s216
      %s220 = sphi 0, %s219
      %s236 = sphi 0, %s220
    $region4: #{tpu_custom_call.1} parent=1 // loop_header_branch
      %27 = sbr.rel (%p25) target = $region8
    $region5: #{tpu_custom_call.1} parent=1 // loop_body
      %s29 = ssub.s32 %s24, 1
      %s30 = ssub.s32 %s24, 2
      %s37 = sadd.s32 1, %s32
      %p38 = scmp.ge.s32.totalorder %s37, 1
      %s39 = scalar_select %p38, 0, %s37
      %s40 = sadd.s32 1, %s31
      %s41 = scalar_select %p38, %s40, %s31
      %p42 = scmp.ge.s32.totalorder %s41, 2
      %s43 = scalar_select %p42, 0, %s41
      %s44 = ssub.s32 %s31, %s43
      %s45 = ssub.s32 %s32, %s39
      %s46 = sor.u32 %s44, %s45
      %p47 = scmp.eq.s32.totalorder %s46, 0
      %s49 = sadd.s32 %s48, 1
      %s50 = scalar_select %p47, %s48, %s49
      %p53 = pneg %p47
      %p54 = scmp.eq.s32.totalorder %s24, 1
      %p55 = por %p53, %p54
      %p56 = scmp.ne.s32.totalorder %s48, %s51
      %p57 = scmp.eq.s32.totalorder %s24, 0
      %p58 = por %p56, %p57
      %p59 = scmp.ne.s32.totalorder %s48, %s51
      %p60 = scmp.eq.s32.totalorder %s29, 1
      %p61 = por %p59, %p60
      %p62 = scmp.ne.s32.totalorder %s51, %s52
      %p63 = scmp.eq.s32.totalorder %s29, 0
      %p64 = por %p62, %p63
      %p65 = scmp.ne.s32.totalorder %s51, %s52
      %p66 = scmp.eq.s32.totalorder %s30, 1
      %p67 = por %p65, %p66
      %p69 = scmp.ne.s32.totalorder %s52, %s68
      %p70 = scmp.eq.s32.totalorder %s30, 0
      %p71 = por %p69, %p70
      %s72 = ssub.s32 %s31, %s43
      %s73 = ssub.s32 %s32, %s39
      %s74 = sor.u32 %s72, %s73
      %p75 = scmp.eq.s32.totalorder %s74, 0
      %s77 = sadd.s32 %s76, 1
      %s78 = scalar_select %p75, %s76, %s77
      %p81 = pneg %p75
      %p82 = scmp.eq.s32.totalorder %s24, 1
      %p83 = por %p81, %p82
      %p84 = scmp.ne.s32.totalorder %s76, %s79
      %p85 = scmp.eq.s32.totalorder %s24, 0
      %p86 = por %p84, %p85
      %p87 = scmp.ne.s32.totalorder %s76, %s79
      %p88 = scmp.eq.s32.totalorder %s29, 1
      %p89 = por %p87, %p88
      %p90 = scmp.ne.s32.totalorder %s79, %s80
      %p91 = scmp.eq.s32.totalorder %s29, 0
      %p92 = por %p90, %p91
      %p93 = scmp.ne.s32.totalorder %s79, %s80
      %p94 = scmp.eq.s32.totalorder %s30, 1
      %p95 = por %p93, %p94
      %p97 = scmp.ne.s32.totalorder %s80, %s96
      %p98 = scmp.eq.s32.totalorder %s30, 0
      %p99 = por %p97, %p98
      %s100 = ssub.s32 %s31, %s43
      %s101 = ssub.s32 %s32, %s39
      %s102 = sor.u32 %s100, %s101
      %p103 = scmp.eq.s32.totalorder %s102, 0
      %s105 = sadd.s32 %s104, 1
      %s106 = scalar_select %p103, %s104, %s105
      %p109 = pneg %p103
      %p110 = scmp.eq.s32.totalorder %s24, 1
      %p111 = por %p109, %p110
      %p112 = scmp.ne.s32.totalorder %s104, %s107
      %p113 = scmp.eq.s32.totalorder %s24, 0
      %p114 = por %p112, %p113
      %p115 = scmp.ne.s32.totalorder %s104, %s107
      %p116 = scmp.eq.s32.totalorder %s29, 1
      %p117 = por %p115, %p116
      %p118 = scmp.ne.s32.totalorder %s107, %s108
      %p119 = scmp.eq.s32.totalorder %s29, 0
      %p120 = por %p118, %p119
      %p121 = scmp.ne.s32.totalorder %s107, %s108
      %p122 = scmp.eq.s32.totalorder %s30, 1
      %p123 = por %p121, %p122
      %p125 = scmp.ne.s32.totalorder %s108, %s124
      %p126 = scmp.eq.s32.totalorder %s30, 0
      %p127 = por %p125, %p126
      %s129 = sadd.s32 %s128, 1
      %p132 = scmp.eq.s32.totalorder %s24, 1
      %p133 = scmp.ne.s32.totalorder %s128, %s130
      %p134 = scmp.eq.s32.totalorder %s24, 0
      %p135 = por %p133, %p134
      %p136 = scmp.ne.s32.totalorder %s128, %s130
      %p137 = scmp.eq.s32.totalorder %s29, 1
      %p138 = por %p136, %p137
      %p139 = scmp.ne.s32.totalorder %s130, %s131
      %p140 = scmp.eq.s32.totalorder %s29, 0
      %p141 = por %p139, %p140
      %p142 = scmp.ne.s32.totalorder %s130, %s131
      %p143 = scmp.eq.s32.totalorder %s30, 1
      %p144 = por %p142, %p143
      %p146 = scmp.ne.s32.totalorder %s131, %s145
      %p147 = scmp.eq.s32.totalorder %s30, 0
      %p148 = por %p146, %p147
      %s150 = sadd.s32 %s149, 1
      %p153 = scmp.eq.s32.totalorder %s24, 1
      %p154 = scmp.ne.s32.totalorder %s149, %s151
      %p155 = scmp.eq.s32.totalorder %s24, 0
      %p156 = por %p154, %p155
      %p157 = scmp.ne.s32.totalorder %s149, %s151
      %p158 = scmp.eq.s32.totalorder %s29, 1
      %p159 = por %p157, %p158
      %p160 = scmp.ne.s32.totalorder %s151, %s152
      %p161 = scmp.eq.s32.totalorder %s29, 0
      %p162 = por %p160, %p161
      %p163 = scmp.ne.s32.totalorder %s151, %s152
      %p164 = scmp.eq.s32.totalorder %s30, 1
      %p165 = por %p163, %p164
      %p167 = scmp.ne.s32.totalorder %s152, %s166
      %p168 = scmp.eq.s32.totalorder %s30, 0
      %p169 = por %p167, %p168
      %s171 = sadd.s32 %s170, 1
      %p174 = scmp.eq.s32.totalorder %s24, 1
      %p175 = scmp.ne.s32.totalorder %s170, %s172
      %p176 = scmp.eq.s32.totalorder %s24, 0
      %p177 = por %p175, %p176
      %p178 = scmp.ne.s32.totalorder %s170, %s172
      %p179 = scmp.eq.s32.totalorder %s29, 1
      %p180 = por %p178, %p179
      %p181 = scmp.ne.s32.totalorder %s172, %s173
      %p182 = scmp.eq.s32.totalorder %s29, 0
      %p183 = por %p181, %p182
      %p184 = scmp.ne.s32.totalorder %s172, %s173
      %p185 = scmp.eq.s32.totalorder %s30, 1
      %p186 = por %p184, %p185
      %p188 = scmp.ne.s32.totalorder %s173, %s187
      %p189 = scmp.eq.s32.totalorder %s30, 0
      %p190 = por %p188, %p189
      %s192 = sadd.s32 %s191, 1
      %p195 = scmp.eq.s32.totalorder %s24, 1
      %p196 = scmp.ne.s32.totalorder %s191, %s193
      %p197 = scmp.eq.s32.totalorder %s24, 0
      %p198 = por %p196, %p197
      %p199 = scmp.ne.s32.totalorder %s191, %s193
      %p200 = scmp.eq.s32.totalorder %s29, 1
      %p201 = por %p199, %p200
      %p202 = scmp.ne.s32.totalorder %s193, %s194
      %p203 = scmp.eq.s32.totalorder %s29, 0
      %p204 = por %p202, %p203
      %p205 = scmp.ne.s32.totalorder %s193, %s194
      %p206 = scmp.eq.s32.totalorder %s30, 1
      %p207 = por %p205, %p206
      %p209 = scmp.ne.s32.totalorder %s194, %s208
      %p210 = scmp.eq.s32.totalorder %s30, 0
      %p211 = por %p209, %p210
      %s212 = ssub.s32 %s31, %s43
      %s213 = ssub.s32 %s32, %s39
      %s214 = sor.u32 %s212, %s213
      %p215 = scmp.eq.s32.totalorder %s214, 0
      %s217 = sadd.s32 %s216, 1
      %s218 = scalar_select %p215, %s216, %s217
      %p221 = pneg %p215
      %p222 = scmp.eq.s32.totalorder %s24, 1
      %p223 = por %p221, %p222
      %p224 = scmp.ne.s32.totalorder %s216, %s219
      %p225 = scmp.eq.s32.totalorder %s24, 0
      %p226 = por %p224, %p225
      %p227 = scmp.ne.s32.totalorder %s216, %s219
      %p228 = scmp.eq.s32.totalorder %s29, 1
      %p229 = por %p227, %p228
      %p230 = scmp.ne.s32.totalorder %s219, %s220
      %p231 = scmp.eq.s32.totalorder %s29, 0
      %p232 = por %p230, %p231
      %p233 = scmp.ne.s32.totalorder %s219, %s220
      %p234 = scmp.eq.s32.totalorder %s30, 1
      %p235 = por %p233, %p234
      %p237 = scmp.ne.s32.totalorder %s220, %s236
      %p238 = scmp.eq.s32.totalorder %s30, 0
      %p239 = por %p237, %p238
      %p240 = scmp.le.s32.totalorder 1, %s24
      %p241 = scmp.lt.s32.totalorder %s24, 3
      %p242 = pnand %p240, %p241
      %p243 = pneg %p242
      // Predicated region
      $region9: #{tpu_custom_call.1} parent=5 // pred_check
        _
      $region10: #{tpu_custom_call.1} parent=5 // pred_check_branch
        %245 = sbr.rel (%p242) target = $region12
      $region11: #{tpu_custom_call.1} parent=5 // pred_region
        %s246 = ssub.s32 %s24, 1
        // Predicated region
        $region13: #{tpu_custom_call.1} parent=11 // pred_check
          %p247 = pneg %p141
        $region14: #{tpu_custom_call.1} parent=11 // pred_check_branch
          %249 = sbr.rel (%p247) target = $region16
        $region15: #{tpu_custom_call.1} parent=11 // pred_region
          %s251 = ssub.s32 512, 512
          %252 = vsyncadd [#allocation9], %s251
          %s253 = sshll.u32 [#allocation8], 4
          %s254 = int_to_ptr.vmem [resolvable:$true] %s253
          %259 = dma.hbm_to_vmem [thread:$0]  %s3, 512, %s254, [#allocation9], 128, 128, 8
        $region16: #{tpu_custom_call.1} parent=11 // pred_fallthru
          _
        // Predicated region
        $region17: #{tpu_custom_call.1} parent=11 // pred_check
          %p260 = pneg %p162
        $region18: #{tpu_custom_call.1} parent=11 // pred_check_branch
          %262 = sbr.rel (%p260) target = $region20
        $region19: #{tpu_custom_call.1} parent=11 // pred_region
          %s264 = ssub.s32 512, 512
          %265 = vsyncadd [#allocation9], %s264
          %s266 = sshll.u32 [#allocation10], 4
          %s267 = int_to_ptr.vmem [resolvable:$true] %s266
          %272 = dma.hbm_to_vmem [thread:$0]  %s4, 512, %s267, [#allocation9], 128, 128, 8
        $region20: #{tpu_custom_call.1} parent=11 // pred_fallthru
          _
        // Predicated region
        $region21: #{tpu_custom_call.1} parent=11 // pred_check
          %p273 = pneg %p183
        $region22: #{tpu_custom_call.1} parent=11 // pred_check_branch
          %275 = sbr.rel (%p273) target = $region24
        $region23: #{tpu_custom_call.1} parent=11 // pred_region
          %s277 = ssub.s32 512, 512
          %278 = vsyncadd [#allocation12], %s277
          %s279 = sshll.u32 [#allocation11], 4
          %s280 = int_to_ptr.vmem [resolvable:$true] %s279
          %285 = dma.hbm_to_vmem [thread:$0]  %s5, 512, %s280, [#allocation12], 128, 128, 8
        $region24: #{tpu_custom_call.1} parent=11 // pred_fallthru
          _
        // Predicated region
        $region25: #{tpu_custom_call.1} parent=11 // pred_check
          %p286 = pneg %p204
        $region26: #{tpu_custom_call.1} parent=11 // pred_check_branch
          %288 = sbr.rel (%p286) target = $region28
        $region27: #{tpu_custom_call.1} parent=11 // pred_region
          %s290 = ssub.s32 512, 512
          %291 = vsyncadd [#allocation12], %s290
          %s292 = sshll.u32 [#allocation13], 4
          %s293 = int_to_ptr.vmem [resolvable:$true] %s292
          %298 = dma.hbm_to_vmem [thread:$0]  %s6, 512, %s293, [#allocation12], 128, 128, 8
        $region28: #{tpu_custom_call.1} parent=11 // pred_fallthru
          _
      $region12: #{tpu_custom_call.1} parent=5 // pred_fallthru
        _
      %p299 = scmp.lt.s32.totalorder %s24, 2
      // Predicated region
      $region29: #{tpu_custom_call.1} parent=5 // pred_check
        %p300 = pneg %p299
      $region30: #{tpu_custom_call.1} parent=5 // pred_check_branch
        %302 = sbr.rel (%p300) target = $region32
      $region31: #{tpu_custom_call.1} parent=5 // pred_region
        // Predicated region
        $region33: #{tpu_custom_call.1} parent=31 // pred_check
          %p303 = pneg %p58
        $region34: #{tpu_custom_call.1} parent=31 // pred_check_branch
          %305 = sbr.rel (%p303) target = $region36
        $region35: #{tpu_custom_call.1} parent=31 // pred_region
          %s306 = sand.u32 %s48, 1
          %s307 = scalar_lea.sflag [#allocation3], %s306
          %s308 = sand.u32 %s48, 1
          %s309 = smul.addr %s308, 8
          %s310 = scalar_lea.vmem [#allocation2], %s309
          %s312 = ssub.s32 128, 128
          %313 = vsyncadd %s307, %s312
          %s314 = sadd.s32 %s32, %s31
          %s315 = smul.addr %s314, 128
          %s316 = scalar_lea.hbm %s0, %s315
          %s318 = sshll.u32 %s310, 4
          %s319 = int_to_ptr.vmem [resolvable:$true] %s318
          %321 = dma.hbm_to_vmem [thread:$0]  %s316, 128, %s319, %s307
        $region36: #{tpu_custom_call.1} parent=31 // pred_fallthru
          _
        // Predicated region
        $region37: #{tpu_custom_call.1} parent=31 // pred_check
          %p322 = pneg %p86
        $region38: #{tpu_custom_call.1} parent=31 // pred_check_branch
          %324 = sbr.rel (%p322) target = $region40
        $region39: #{tpu_custom_call.1} parent=31 // pred_region
          %s325 = sand.u32 %s24, 1
          %s326 = scalar_lea.sflag [#allocation6], %s325
          %s327 = sand.u32 %s76, 1
          %s328 = smul.addr %s327, 8
          %s329 = scalar_lea.vmem [#allocation5], %s328
          %s331 = ssub.s32 128, 128
          %332 = vsyncadd %s326, %s331
          %s333 = sadd.s32 %s32, %s31
          %s334 = smul.addr %s333, 128
          %s335 = scalar_lea.hbm %s1, %s334
          %s337 = sshll.u32 %s329, 4
          %s338 = int_to_ptr.vmem [resolvable:$true] %s337
          %340 = dma.hbm_to_vmem [thread:$0]  %s335, 128, %s338, %s326
        $region40: #{tpu_custom_call.1} parent=31 // pred_fallthru
          _
        // Predicated region
        $region41: #{tpu_custom_call.1} parent=31 // pred_check
          %p341 = pneg %p114
        $region42: #{tpu_custom_call.1} parent=31 // pred_check_branch
          %343 = sbr.rel (%p341) target = $region44
        $region43: #{tpu_custom_call.1} parent=31 // pred_region
          %s344 = sand.u32 %s24, 1
          %s345 = scalar_lea.sflag [#allocation6], %s344
          %s346 = sand.u32 %s104, 1
          %s347 = smul.addr %s346, 8
          %s348 = scalar_lea.vmem [#allocation7], %s347
          %s350 = ssub.s32 128, 128
          %351 = vsyncadd %s345, %s350
          %s352 = sadd.s32 %s32, %s31
          %s353 = smul.addr %s352, 128
          %s354 = scalar_lea.hbm %s2, %s353
          %s356 = sshll.u32 %s348, 4
          %s357 = int_to_ptr.vmem [resolvable:$true] %s356
          %359 = dma.hbm_to_vmem [thread:$0]  %s354, 128, %s357, %s345
        $region44: #{tpu_custom_call.1} parent=31 // pred_fallthru
          _
      $region32: #{tpu_custom_call.1} parent=5 // pred_fallthru
        _
      %p360 = scmp.le.s32.totalorder 1, %s24
      %p361 = scmp.lt.s32.totalorder %s24, 3
      %p362 = pnand %p360, %p361
      %p363 = pneg %p362
      // Predicated region
      $region45: #{tpu_custom_call.1} parent=5 // pred_check
        _
      $region46: #{tpu_custom_call.1} parent=5 // pred_check_branch
        %365 = sbr.rel (%p362) target = $region48
      $region47: #{tpu_custom_call.1} parent=5 // pred_region
        %s366 = ssub.s32 %s24, 1
        %s367 = sand.u32 %s51, 1
        %s368 = scalar_lea.sflag [#allocation3], %s367
        %s369 = sand.u32 %s51, 1
        %s370 = smul.addr %s369, 8
        %s371 = scalar_lea.vmem [#allocation2], %s370
        // Predicated region
        $region49: #{tpu_custom_call.1} parent=47 // pred_check
          %p372 = pneg %p64
        $region50: #{tpu_custom_call.1} parent=47 // pred_check_branch
          %374 = sbr.rel (%p372) target = $region52
        $region51: #{tpu_custom_call.1} parent=47 // pred_region
          %375 = dma.done %s368, 128
        $region52: #{tpu_custom_call.1} parent=47 // pred_fallthru
          _
        %s376 = sand.u32 %s29, 1
        %s377 = scalar_lea.sflag [#allocation6], %s376
        %s378 = sand.u32 %s79, 1
        %s379 = smul.addr %s378, 8
        %s380 = scalar_lea.vmem [#allocation5], %s379
        // Predicated region
        $region53: #{tpu_custom_call.1} parent=47 // pred_check
          %p381 = pneg %p92
        $region54: #{tpu_custom_call.1} parent=47 // pred_check_branch
          %383 = sbr.rel (%p381) target = $region56
        $region55: #{tpu_custom_call.1} parent=47 // pred_region
          %384 = dma.done %s377, 128
        $region56: #{tpu_custom_call.1} parent=47 // pred_fallthru
          _
        %s385 = sand.u32 %s29, 1
        %s386 = scalar_lea.sflag [#allocation6], %s385
        %s387 = sand.u32 %s107, 1
        %s388 = smul.addr %s387, 8
        %s389 = scalar_lea.vmem [#allocation7], %s388
        // Predicated region
        $region57: #{tpu_custom_call.1} parent=47 // pred_check
          %p390 = pneg %p120
        $region58: #{tpu_custom_call.1} parent=47 // pred_check_branch
          %392 = sbr.rel (%p390) target = $region60
        $region59: #{tpu_custom_call.1} parent=47 // pred_region
          %393 = dma.done %s386, 128
        $region60: #{tpu_custom_call.1} parent=47 // pred_fallthru
          _
        // Predicated region
        $region61: #{tpu_custom_call.1} parent=47 // pred_check
          %p394 = pneg %p141
        $region62: #{tpu_custom_call.1} parent=47 // pred_check_branch
          %396 = sbr.rel (%p394) target = $region64
        $region63: #{tpu_custom_call.1} parent=47 // pred_region
          %397 = dma.done [#allocation9], 512
        $region64: #{tpu_custom_call.1} parent=47 // pred_fallthru
          _
        // Predicated region
        $region65: #{tpu_custom_call.1} parent=47 // pred_check
          %p398 = pneg %p162
        $region66: #{tpu_custom_call.1} parent=47 // pred_check_branch
          %400 = sbr.rel (%p398) target = $region68
        $region67: #{tpu_custom_call.1} parent=47 // pred_region
          %401 = dma.done [#allocation9], 512
        $region68: #{tpu_custom_call.1} parent=47 // pred_fallthru
          _
        // Predicated region
        $region69: #{tpu_custom_call.1} parent=47 // pred_check
          %p402 = pneg %p183
        $region70: #{tpu_custom_call.1} parent=47 // pred_check_branch
          %404 = sbr.rel (%p402) target = $region72
        $region71: #{tpu_custom_call.1} parent=47 // pred_region
          %405 = dma.done [#allocation12], 512
        $region72: #{tpu_custom_call.1} parent=47 // pred_fallthru
          _
        // Predicated region
        $region73: #{tpu_custom_call.1} parent=47 // pred_check
          %p406 = pneg %p204
        $region74: #{tpu_custom_call.1} parent=47 // pred_check_branch
          %408 = sbr.rel (%p406) target = $region76
        $region75: #{tpu_custom_call.1} parent=47 // pred_region
          %409 = dma.done [#allocation12], 512
        $region76: #{tpu_custom_call.1} parent=47 // pred_fallthru
          _
        %s410 = sand.u32 %s51, 1
        %s411 = scalar_lea.sflag [#allocation3], %s410
        %s412 = sand.u32 %s51, 1
        %s413 = smul.addr %s412, 8
        %s414 = scalar_lea.vmem [#allocation2], %s413
        %p415 = pneg %p64
        %p416 = pneg %p61
        %s417 = sand.u32 %s29, 1
        %s418 = scalar_lea.sflag [#allocation6], %s417
        %s419 = sand.u32 %s79, 1
        %s420 = smul.addr %s419, 8
        %s421 = scalar_lea.vmem [#allocation5], %s420
        %p422 = pneg %p92
        %p423 = pneg %p89
        %s424 = sand.u32 %s29, 1
        %s425 = scalar_lea.sflag [#allocation6], %s424
        %s426 = sand.u32 %s107, 1
        %s427 = smul.addr %s426, 8
        %s428 = scalar_lea.vmem [#allocation7], %s427
        %p429 = pneg %p120
        %p430 = pneg %p117
        %p431 = pneg %p141
        %p432 = pneg %p138
        %p433 = pneg %p162
        %p434 = pneg %p159
        %p435 = pneg %p183
        %p436 = pneg %p180
        %p437 = pneg %p204
        %p438 = pneg %p201
        %p439 = pneg %p232
        %p440 = pneg %p229
        %s441 = sand.u32 %s219, 1
        %s442 = scalar_lea.sflag [#allocation4], %s441
        %s443 = sand.u32 %s219, 1
        %s444 = smul.addr %s443, 8
        %s445 = scalar_lea.vmem [#allocation14], %s444
        %v446 = vld [vmem:[%s371] sm:$0xff]
        %v447 = vld [vmem:[%s380] sm:$0xff]
        %v448 = vld [vmem:[%s389] sm:$0xff]
        %v449 = vld [vmem:[#allocation8] sm:$0xff]
        %v450 = vld [vmem:[#allocation8 + $0x8] sm:$0xff]
        %v451 = vld [vmem:[#allocation8 + $0x10] sm:$0xff]
        %v452 = vld [vmem:[#allocation8 + $0x18] sm:$0xff]
        %vm453 = vcmask 261120
        %v455 = vsel %vm453, %v446, 0
        %v458 = vsel %vm453, %v449, 0
        %v461 = vsel %vm453, %v450, 0
        %v464 = vsel %vm453, %v451, 0
        %v467 = vsel %vm453, %v452, 0
        %469 = vmatprep.subr.mxu0 0.0
        %470 = vmatpush1.xpose.msra.mxu0 0.0
        %471 = vmatprep.subr.mxu0 0.0
        %472 = vmatpush1.xpose.msra.mxu0 0.0
        %473 = vmatprep.subr.mxu0 0.0
        %474 = vmatpush1.xpose.msra.mxu0 0.0
        %475 = vmatprep.subr.mxu0 0.0
        %476 = vmatpush1.xpose.msra.mxu0 0.0
        %477 = vmatprep.subr.mxu0 0.0
        %478 = vmatpush1.xpose.msra.mxu0 0.0
        %479 = vmatprep.subr.mxu0 0.0
        %480 = vmatpush1.xpose.msra.mxu0 0.0
        %481 = vmatprep.subr.mxu0 0.0
        %482 = vmatpush1.xpose.msra.mxu0 0.0
        %483 = vmatprep.subr.mxu0 0.0
        %484 = vmatpush1.xpose.msra.mxu0 0.0
        %485 = vmatprep.subr.mxu0 0.0
        %486 = vmatpush1.xpose.msra.mxu0 0.0
        %487 = vmatprep.subr.mxu0 0.0
        %488 = vmatpush1.xpose.msra.mxu0 0.0
        %489 = vmatprep.subr.mxu0 0.0
        %490 = vmatpush1.xpose.msra.mxu0 0.0
        %491 = vmatprep.subr.mxu0 0.0
        %492 = vmatpush1.xpose.msra.mxu0 0.0
        %493 = vmatprep.subr.mxu0 0.0
        %494 = vmatpush1.xpose.msra.mxu0 %v467
        %495 = vmatprep.subr.mxu0 0.0
        %496 = vmatpush1.xpose.msra.mxu0 %v464
        %497 = vmatprep.subr.mxu0 0.0
        %498 = vmatpush1.xpose.msra.mxu0 %v461
        %499 = vmatprep.subr.mxu0 0.0
        %500 = vmatpush1.xpose.msra.mxu0 %v458
        %501 = vmatprep.subr.mxu0 0.0
        %502 = vmatpush2.xpose.msra.mxu0 0.0
        %503 = vmatprep.subr.mxu0 0.0
        %504 = vmatpush2.xpose.msra.mxu0 0.0
        %505 = vmatprep.subr.mxu0 0.0
        %506 = vmatpush2.xpose.msra.mxu0 0.0
        %507 = vmatprep.subr.mxu0 0.0
        %508 = vmatpush2.xpose.msra.mxu0 0.0
        %509 = vmatprep.subr.mxu0 0.0
        %510 = vmatpush2.xpose.msra.mxu0 0.0
        %511 = vmatprep.subr.mxu0 0.0
        %512 = vmatpush2.xpose.msra.mxu0 0.0
        %513 = vmatprep.subr.mxu0 0.0
        %514 = vmatpush2.xpose.msra.mxu0 0.0
        %515 = vmatprep.subr.mxu0 0.0
        %516 = vmatpush2.xpose.msra.mxu0 0.0
        %517 = vmatprep.subr.mxu0 0.0
        %518 = vmatpush2.xpose.msra.mxu0 0.0
        %519 = vmatprep.subr.mxu0 0.0
        %520 = vmatpush2.xpose.msra.mxu0 0.0
        %521 = vmatprep.subr.mxu0 0.0
        %522 = vmatpush2.xpose.msra.mxu0 0.0
        %523 = vmatprep.subr.mxu0 0.0
        %524 = vmatpush2.xpose.msra.mxu0 0.0
        %525 = vmatprep.subr.mxu0 0.0
        %526 = vmatpush2.xpose.msra.mxu0 0.0
        %527 = vmatprep.subr.mxu0 0.0
        %528 = vmatpush2.xpose.msra.mxu0 0.0
        %529 = vmatprep.subr.mxu0 0.0
        %530 = vmatpush2.xpose.msra.mxu0 0.0
        %531 = vmatprep.subr.mxu0 0.0
        %532 = vmatpush2.xpose.msra.mxu0 0.0
        %533 = vmatprep.mubr.f32.mxu0 0.0
        %534 = vmatmul.mubr.f32.gmra.mxu0 %v455
        %v535 = vpop.f32.mrf.mxu0
        %v536 = vadd.f32 0.0, %v535
        %v537 = vpop.f32.mrf.mxu0
        %538 = vdwg.mxu0
        %v539 = vld [vmem:[#allocation10] sm:$0xff]
        %v540 = vld [vmem:[#allocation10 + $0x8] sm:$0xff]
        %v541 = vld [vmem:[#allocation10 + $0x10] sm:$0xff]
        %v542 = vld [vmem:[#allocation10 + $0x18] sm:$0xff]
        %v544 = vsel %vm453, %v447, 0
        %v547 = vsel %vm453, %v539, 0
        %v550 = vsel %vm453, %v540, 0
        %v553 = vsel %vm453, %v541, 0
        %v556 = vsel %vm453, %v542, 0
        %558 = vmatprep.subr.mxu0 0.0
        %559 = vmatpush1.xpose.msra.mxu0 0.0
        %560 = vmatprep.subr.mxu0 0.0
        %561 = vmatpush1.xpose.msra.mxu0 0.0
        %562 = vmatprep.subr.mxu0 0.0
        %563 = vmatpush1.xpose.msra.mxu0 0.0
        %564 = vmatprep.subr.mxu0 0.0
        %565 = vmatpush1.xpose.msra.mxu0 0.0
        %566 = vmatprep.subr.mxu0 0.0
        %567 = vmatpush1.xpose.msra.mxu0 0.0
        %568 = vmatprep.subr.mxu0 0.0
        %569 = vmatpush1.xpose.msra.mxu0 0.0
        %570 = vmatprep.subr.mxu0 0.0
        %571 = vmatpush1.xpose.msra.mxu0 0.0
        %572 = vmatprep.subr.mxu0 0.0
        %573 = vmatpush1.xpose.msra.mxu0 0.0
        %574 = vmatprep.subr.mxu0 0.0
        %575 = vmatpush1.xpose.msra.mxu0 0.0
        %576 = vmatprep.subr.mxu0 0.0
        %577 = vmatpush1.xpose.msra.mxu0 0.0
        %578 = vmatprep.subr.mxu0 0.0
        %579 = vmatpush1.xpose.msra.mxu0 0.0
        %580 = vmatprep.subr.mxu0 0.0
        %581 = vmatpush1.xpose.msra.mxu0 0.0
        %582 = vmatprep.subr.mxu0 0.0
        %583 = vmatpush1.xpose.msra.mxu0 %v556
        %584 = vmatprep.subr.mxu0 0.0
        %585 = vmatpush1.xpose.msra.mxu0 %v553
        %586 = vmatprep.subr.mxu0 0.0
        %587 = vmatpush1.xpose.msra.mxu0 %v550
        %588 = vmatprep.subr.mxu0 0.0
        %589 = vmatpush1.xpose.msra.mxu0 %v547
        %590 = vmatprep.subr.mxu0 0.0
        %591 = vmatpush2.xpose.msra.mxu0 0.0
        %592 = vmatprep.subr.mxu0 0.0
        %593 = vmatpush2.xpose.msra.mxu0 0.0
        %594 = vmatprep.subr.mxu0 0.0
        %595 = vmatpush2.xpose.msra.mxu0 0.0
        %596 = vmatprep.subr.mxu0 0.0
        %597 = vmatpush2.xpose.msra.mxu0 0.0
        %598 = vmatprep.subr.mxu0 0.0
        %599 = vmatpush2.xpose.msra.mxu0 0.0
        %600 = vmatprep.subr.mxu0 0.0
        %601 = vmatpush2.xpose.msra.mxu0 0.0
        %602 = vmatprep.subr.mxu0 0.0
        %603 = vmatpush2.xpose.msra.mxu0 0.0
        %604 = vmatprep.subr.mxu0 0.0
        %605 = vmatpush2.xpose.msra.mxu0 0.0
        %606 = vmatprep.subr.mxu0 0.0
        %607 = vmatpush2.xpose.msra.mxu0 0.0
        %608 = vmatprep.subr.mxu0 0.0
        %609 = vmatpush2.xpose.msra.mxu0 0.0
        %610 = vmatprep.subr.mxu0 0.0
        %611 = vmatpush2.xpose.msra.mxu0 0.0
        %612 = vmatprep.subr.mxu0 0.0
        %613 = vmatpush2.xpose.msra.mxu0 0.0
        %614 = vmatprep.subr.mxu0 0.0
        %615 = vmatpush2.xpose.msra.mxu0 0.0
        %616 = vmatprep.subr.mxu0 0.0
        %617 = vmatpush2.xpose.msra.mxu0 0.0
        %618 = vmatprep.subr.mxu0 0.0
        %619 = vmatpush2.xpose.msra.mxu0 0.0
        %620 = vmatprep.subr.mxu0 0.0
        %621 = vmatpush2.xpose.msra.mxu0 0.0
        %622 = vmatprep.mubr.f32.mxu0 0.0
        %623 = vmatmul.mubr.f32.gmra.mxu0 %v544
        %v624 = vpop.f32.mrf.mxu0
        %v625 = vadd.f32 0.0, %v624
        %v626 = vpop.f32.mrf.mxu0
        %627 = vdwg.mxu0
        %v628 = vld [vmem:[#allocation11] sm:$0xff]
        %v629 = vld [vmem:[#allocation11 + $0x8] sm:$0xff]
        %v630 = vld [vmem:[#allocation11 + $0x10] sm:$0xff]
        %v631 = vld [vmem:[#allocation11 + $0x18] sm:$0xff]
        %v633 = vsel %vm453, %v448, 0
        %v636 = vsel %vm453, %v628, 0
        %v639 = vsel %vm453, %v629, 0
        %v642 = vsel %vm453, %v630, 0
        %v645 = vsel %vm453, %v631, 0
        %647 = vmatprep.subr.mxu0 0.0
        %648 = vmatpush1.xpose.msra.mxu0 0.0
        %649 = vmatprep.subr.mxu0 0.0
        %650 = vmatpush1.xpose.msra.mxu0 0.0
        %651 = vmatprep.subr.mxu0 0.0
        %652 = vmatpush1.xpose.msra.mxu0 0.0
        %653 = vmatprep.subr.mxu0 0.0
        %654 = vmatpush1.xpose.msra.mxu0 0.0
        %655 = vmatprep.subr.mxu0 0.0
        %656 = vmatpush1.xpose.msra.mxu0 0.0
        %657 = vmatprep.subr.mxu0 0.0
        %658 = vmatpush1.xpose.msra.mxu0 0.0
        %659 = vmatprep.subr.mxu0 0.0
        %660 = vmatpush1.xpose.msra.mxu0 0.0
        %661 = vmatprep.subr.mxu0 0.0
        %662 = vmatpush1.xpose.msra.mxu0 0.0
        %663 = vmatprep.subr.mxu0 0.0
        %664 = vmatpush1.xpose.msra.mxu0 0.0
        %665 = vmatprep.subr.mxu0 0.0
        %666 = vmatpush1.xpose.msra.mxu0 0.0
        %667 = vmatprep.subr.mxu0 0.0
        %668 = vmatpush1.xpose.msra.mxu0 0.0
        %669 = vmatprep.subr.mxu0 0.0
        %670 = vmatpush1.xpose.msra.mxu0 0.0
        %671 = vmatprep.subr.mxu0 0.0
        %672 = vmatpush1.xpose.msra.mxu0 %v645
        %673 = vmatprep.subr.mxu0 0.0
        %674 = vmatpush1.xpose.msra.mxu0 %v642
        %675 = vmatprep.subr.mxu0 0.0
        %676 = vmatpush1.xpose.msra.mxu0 %v639
        %677 = vmatprep.subr.mxu0 0.0
        %678 = vmatpush1.xpose.msra.mxu0 %v636
        %679 = vmatprep.subr.mxu0 0.0
        %680 = vmatpush2.xpose.msra.mxu0 0.0
        %681 = vmatprep.subr.mxu0 0.0
        %682 = vmatpush2.xpose.msra.mxu0 0.0
        %683 = vmatprep.subr.mxu0 0.0
        %684 = vmatpush2.xpose.msra.mxu0 0.0
        %685 = vmatprep.subr.mxu0 0.0
        %686 = vmatpush2.xpose.msra.mxu0 0.0
        %687 = vmatprep.subr.mxu0 0.0
        %688 = vmatpush2.xpose.msra.mxu0 0.0
        %689 = vmatprep.subr.mxu0 0.0
        %690 = vmatpush2.xpose.msra.mxu0 0.0
        %691 = vmatprep.subr.mxu0 0.0
        %692 = vmatpush2.xpose.msra.mxu0 0.0
        %693 = vmatprep.subr.mxu0 0.0
        %694 = vmatpush2.xpose.msra.mxu0 0.0
        %695 = vmatprep.subr.mxu0 0.0
        %696 = vmatpush2.xpose.msra.mxu0 0.0
        %697 = vmatprep.subr.mxu0 0.0
        %698 = vmatpush2.xpose.msra.mxu0 0.0
        %699 = vmatprep.subr.mxu0 0.0
        %700 = vmatpush2.xpose.msra.mxu0 0.0
        %701 = vmatprep.subr.mxu0 0.0
        %702 = vmatpush2.xpose.msra.mxu0 0.0
        %703 = vmatprep.subr.mxu0 0.0
        %704 = vmatpush2.xpose.msra.mxu0 0.0
        %705 = vmatprep.subr.mxu0 0.0
        %706 = vmatpush2.xpose.msra.mxu0 0.0
        %707 = vmatprep.subr.mxu0 0.0
        %708 = vmatpush2.xpose.msra.mxu0 0.0
        %709 = vmatprep.subr.mxu0 0.0
        %710 = vmatpush2.xpose.msra.mxu0 0.0
        %711 = vmatprep.mubr.f32.mxu0 0.0
        %712 = vmatmul.mubr.f32.gmra.mxu0 %v633
        %v713 = vpop.f32.mrf.mxu0
        %v714 = vadd.f32 0.0, %v713
        %v715 = vpop.f32.mrf.mxu0
        %716 = vdwg.mxu0
        %v717 = vlaneseq
        %v718 = vshrl.u32 %v717, 7
        %v719 = vlaneseq
        %v720 = vand.u32 %v719, 127
        %vm721 = vcmp.le.s32.totalorder %v720, %v718
        %v722 = vld [vmem:[#allocation13] sm:$0xff]
        %v723 = vld [vmem:[#allocation13 + $0x8] sm:$0xff]
        %v724 = vld [vmem:[#allocation13 + $0x10] sm:$0xff]
        %v725 = vld [vmem:[#allocation13 + $0x18] sm:$0xff]
        %vm726 = vcmask 64512
        %v728 = vsel %vm726, %v536, 0
        %v731 = vsel %vm726, %v625, 0
        %733 = vmatprep.subr.mxu0 0.0
        %734 = vmatpush1.xpose.msra.mxu0 0.0
        %735 = vmatprep.subr.mxu0 0.0
        %736 = vmatpush1.xpose.msra.mxu0 0.0
        %737 = vmatprep.subr.mxu0 0.0
        %738 = vmatpush1.xpose.msra.mxu0 0.0
        %739 = vmatprep.subr.mxu0 0.0
        %740 = vmatpush1.xpose.msra.mxu0 0.0
        %741 = vmatprep.subr.mxu0 0.0
        %742 = vmatpush1.xpose.msra.mxu0 0.0
        %743 = vmatprep.subr.mxu0 0.0
        %744 = vmatpush1.xpose.msra.mxu0 0.0
        %745 = vmatprep.subr.mxu0 0.0
        %746 = vmatpush1.xpose.msra.mxu0 0.0
        %747 = vmatprep.subr.mxu0 0.0
        %748 = vmatpush1.xpose.msra.mxu0 0.0
        %749 = vmatprep.subr.mxu0 0.0
        %750 = vmatpush1.xpose.msra.mxu0 0.0
        %751 = vmatprep.subr.mxu0 0.0
        %752 = vmatpush1.xpose.msra.mxu0 0.0
        %753 = vmatprep.subr.mxu0 0.0
        %754 = vmatpush1.xpose.msra.mxu0 0.0
        %755 = vmatprep.subr.mxu0 0.0
        %756 = vmatpush1.xpose.msra.mxu0 0.0
        %757 = vmatprep.subr.mxu0 0.0
        %758 = vmatpush1.xpose.msra.mxu0 0.0
        %759 = vmatprep.subr.mxu0 0.0
        %760 = vmatpush1.xpose.msra.mxu0 0.0
        %761 = vmatprep.subr.mxu0 0.0
        %762 = vmatpush1.xpose.msra.mxu0 0.0
        %763 = vmatprep.subr.mxu0 0.0
        %764 = vmatpush1.xpose.msra.mxu0 %v731
        %765 = vmatprep.subr.mxu0 0.0
        %766 = vmatpush2.xpose.msra.mxu0 0.0
        %767 = vmatprep.subr.mxu0 0.0
        %768 = vmatpush2.xpose.msra.mxu0 0.0
        %769 = vmatprep.subr.mxu0 0.0
        %770 = vmatpush2.xpose.msra.mxu0 0.0
        %771 = vmatprep.subr.mxu0 0.0
        %772 = vmatpush2.xpose.msra.mxu0 0.0
        %773 = vmatprep.subr.mxu0 0.0
        %774 = vmatpush2.xpose.msra.mxu0 0.0
        %775 = vmatprep.subr.mxu0 0.0
        %776 = vmatpush2.xpose.msra.mxu0 0.0
        %777 = vmatprep.subr.mxu0 0.0
        %778 = vmatpush2.xpose.msra.mxu0 0.0
        %779 = vmatprep.subr.mxu0 0.0
        %780 = vmatpush2.xpose.msra.mxu0 0.0
        %781 = vmatprep.subr.mxu0 0.0
        %782 = vmatpush2.xpose.msra.mxu0 0.0
        %783 = vmatprep.subr.mxu0 0.0
        %784 = vmatpush2.xpose.msra.mxu0 0.0
        %785 = vmatprep.subr.mxu0 0.0
        %786 = vmatpush2.xpose.msra.mxu0 0.0
        %787 = vmatprep.subr.mxu0 0.0
        %788 = vmatpush2.xpose.msra.mxu0 0.0
        %789 = vmatprep.subr.mxu0 0.0
        %790 = vmatpush2.xpose.msra.mxu0 0.0
        %791 = vmatprep.subr.mxu0 0.0
        %792 = vmatpush2.xpose.msra.mxu0 0.0
        %793 = vmatprep.subr.mxu0 0.0
        %794 = vmatpush2.xpose.msra.mxu0 0.0
        %795 = vmatprep.subr.mxu0 0.0
        %796 = vmatpush2.xpose.msra.mxu0 0.0
        %797 = vmatprep.mubr.f32.mxu0 0.0
        %798 = vmatmul.mubr.f32.gmra.mxu0 %v728
        %v799 = vpop.f32.mrf.mxu0
        %v800 = vadd.f32 0.0, %v799
        %v801 = vpop.f32.mrf.mxu0
        %802 = vdwg.mxu0
        %v803 = vsel %vm721, %v800, -1e+30
        %v804 = vsel %vm726, %v803, -inf
        %805 = vmax.xlane.f32.xlu0 %v804
        %v806 = vpop.xlane.xlu0 %805
        %v807 = vsub.f32 %v803, %v806
        %v808 = vmul.f32 %v807, 1.442695
        %v809 = vpow.pop %v808
        %v810 = vsel %vm726, %v809, 0.0
        %811 = vadd.xlane.f32.xlu0 %v810
        %v812 = vpop.xlane.xlu0 %811
        %v813 = vrcp.pop %v812
        %v814 = vmul.f32 %v809, %v813
        %v816 = vsel %vm726, %v814, 0
        %818 = vmatprep.subr.mxu0 0.0
        %819 = vmatpush1.msra.mxu0 0.0
        %820 = vmatprep.subr.mxu0 0.0
        %821 = vmatpush1.msra.mxu0 0.0
        %822 = vmatprep.subr.mxu0 0.0
        %823 = vmatpush1.msra.mxu0 0.0
        %824 = vmatprep.subr.mxu0 0.0
        %825 = vmatpush1.msra.mxu0 0.0
        %826 = vmatprep.subr.mxu0 0.0
        %827 = vmatpush1.msra.mxu0 0.0
        %828 = vmatprep.subr.mxu0 0.0
        %829 = vmatpush1.msra.mxu0 0.0
        %830 = vmatprep.subr.mxu0 0.0
        %831 = vmatpush1.msra.mxu0 0.0
        %832 = vmatprep.subr.mxu0 0.0
        %833 = vmatpush1.msra.mxu0 0.0
        %834 = vmatprep.subr.mxu0 0.0
        %835 = vmatpush1.msra.mxu0 0.0
        %836 = vmatprep.subr.mxu0 0.0
        %837 = vmatpush1.msra.mxu0 0.0
        %838 = vmatprep.subr.mxu0 0.0
        %839 = vmatpush1.msra.mxu0 0.0
        %840 = vmatprep.subr.mxu0 0.0
        %841 = vmatpush1.msra.mxu0 0.0
        %842 = vmatprep.subr.mxu0 0.0
        %843 = vmatpush1.msra.mxu0 0.0
        %844 = vmatprep.subr.mxu0 0.0
        %845 = vmatpush1.msra.mxu0 0.0
        %846 = vmatprep.subr.mxu0 0.0
        %847 = vmatpush1.msra.mxu0 0.0
        %848 = vmatprep.subr.mxu0 0.0
        %849 = vmatpush1.msra.mxu0 %v714
        %850 = vmatprep.subr.mxu0 0.0
        %851 = vmatpush2.msra.mxu0 0.0
        %852 = vmatprep.subr.mxu0 0.0
        %853 = vmatpush2.msra.mxu0 0.0
        %854 = vmatprep.subr.mxu0 0.0
        %855 = vmatpush2.msra.mxu0 0.0
        %856 = vmatprep.subr.mxu0 0.0
        %857 = vmatpush2.msra.mxu0 0.0
        %858 = vmatprep.subr.mxu0 0.0
        %859 = vmatpush2.msra.mxu0 0.0
        %860 = vmatprep.subr.mxu0 0.0
        %861 = vmatpush2.msra.mxu0 0.0
        %862 = vmatprep.subr.mxu0 0.0
        %863 = vmatpush2.msra.mxu0 0.0
        %864 = vmatprep.subr.mxu0 0.0
        %865 = vmatpush2.msra.mxu0 0.0
        %866 = vmatprep.subr.mxu0 0.0
        %867 = vmatpush2.msra.mxu0 0.0
        %868 = vmatprep.subr.mxu0 0.0
        %869 = vmatpush2.msra.mxu0 0.0
        %870 = vmatprep.subr.mxu0 0.0
        %871 = vmatpush2.msra.mxu0 0.0
        %872 = vmatprep.subr.mxu0 0.0
        %873 = vmatpush2.msra.mxu0 0.0
        %874 = vmatprep.subr.mxu0 0.0
        %875 = vmatpush2.msra.mxu0 0.0
        %876 = vmatprep.subr.mxu0 0.0
        %877 = vmatpush2.msra.mxu0 0.0
        %878 = vmatprep.subr.mxu0 0.0
        %879 = vmatpush2.msra.mxu0 0.0
        %880 = vmatprep.subr.mxu0 0.0
        %881 = vmatpush2.msra.mxu0 0.0
        %882 = vmatprep.mubr.f32.mxu0 0.0
        %883 = vmatmul.mubr.f32.gmra.mxu0 %v816
        %v884 = vpop.f32.mrf.mxu0
        %v885 = vadd.f32 0.0, %v884
        %v886 = vpop.f32.mrf.mxu0
        %887 = vdwg.mxu0
        %888 = vrot.lane.b32.xlu0 %v536, 120
        %v889 = vpop.permute.xlu0 %888
        %890 = vrot.lane.b32.xlu0 %v625, 120
        %v891 = vpop.permute.xlu0 %890
        %v892 = vsel %vm726, %v889, 0
        %v894 = vsel %vm726, %v891, 0
        %896 = vmatprep.subr.mxu0 0.0
        %897 = vmatpush1.xpose.msra.mxu0 0.0
        %898 = vmatprep.subr.mxu0 0.0
        %899 = vmatpush1.xpose.msra.mxu0 0.0
        %900 = vmatprep.subr.mxu0 0.0
        %901 = vmatpush1.xpose.msra.mxu0 0.0
        %902 = vmatprep.subr.mxu0 0.0
        %903 = vmatpush1.xpose.msra.mxu0 0.0
        %904 = vmatprep.subr.mxu0 0.0
        %905 = vmatpush1.xpose.msra.mxu0 0.0
        %906 = vmatprep.subr.mxu0 0.0
        %907 = vmatpush1.xpose.msra.mxu0 0.0
        %908 = vmatprep.subr.mxu0 0.0
        %909 = vmatpush1.xpose.msra.mxu0 0.0
        %910 = vmatprep.subr.mxu0 0.0
        %911 = vmatpush1.xpose.msra.mxu0 0.0
        %912 = vmatprep.subr.mxu0 0.0
        %913 = vmatpush1.xpose.msra.mxu0 0.0
        %914 = vmatprep.subr.mxu0 0.0
        %915 = vmatpush1.xpose.msra.mxu0 0.0
        %916 = vmatprep.subr.mxu0 0.0
        %917 = vmatpush1.xpose.msra.mxu0 0.0
        %918 = vmatprep.subr.mxu0 0.0
        %919 = vmatpush1.xpose.msra.mxu0 0.0
        %920 = vmatprep.subr.mxu0 0.0
        %921 = vmatpush1.xpose.msra.mxu0 0.0
        %922 = vmatprep.subr.mxu0 0.0
        %923 = vmatpush1.xpose.msra.mxu0 0.0
        %924 = vmatprep.subr.mxu0 0.0
        %925 = vmatpush1.xpose.msra.mxu0 0.0
        %926 = vmatprep.subr.mxu0 0.0
        %927 = vmatpush1.xpose.msra.mxu0 %v894
        %928 = vmatprep.subr.mxu0 0.0
        %929 = vmatpush2.xpose.msra.mxu0 0.0
        %930 = vmatprep.subr.mxu0 0.0
        %931 = vmatpush2.xpose.msra.mxu0 0.0
        %932 = vmatprep.subr.mxu0 0.0
        %933 = vmatpush2.xpose.msra.mxu0 0.0
        %934 = vmatprep.subr.mxu0 0.0
        %935 = vmatpush2.xpose.msra.mxu0 0.0
        %936 = vmatprep.subr.mxu0 0.0
        %937 = vmatpush2.xpose.msra.mxu0 0.0
        %938 = vmatprep.subr.mxu0 0.0
        %939 = vmatpush2.xpose.msra.mxu0 0.0
        %940 = vmatprep.subr.mxu0 0.0
        %941 = vmatpush2.xpose.msra.mxu0 0.0
        %942 = vmatprep.subr.mxu0 0.0
        %943 = vmatpush2.xpose.msra.mxu0 0.0
        %944 = vmatprep.subr.mxu0 0.0
        %945 = vmatpush2.xpose.msra.mxu0 0.0
        %946 = vmatprep.subr.mxu0 0.0
        %947 = vmatpush2.xpose.msra.mxu0 0.0
        %948 = vmatprep.subr.mxu0 0.0
        %949 = vmatpush2.xpose.msra.mxu0 0.0
        %950 = vmatprep.subr.mxu0 0.0
        %951 = vmatpush2.xpose.msra.mxu0 0.0
        %952 = vmatprep.subr.mxu0 0.0
        %953 = vmatpush2.xpose.msra.mxu0 0.0
        %954 = vmatprep.subr.mxu0 0.0
        %955 = vmatpush2.xpose.msra.mxu0 0.0
        %956 = vmatprep.subr.mxu0 0.0
        %957 = vmatpush2.xpose.msra.mxu0 0.0
        %958 = vmatprep.subr.mxu0 0.0
        %959 = vmatpush2.xpose.msra.mxu0 0.0
        %960 = vmatprep.mubr.f32.mxu0 0.0
        %961 = vmatmul.mubr.f32.gmra.mxu0 %v892
        %v962 = vpop.f32.mrf.mxu0
        %v963 = vadd.f32 0.0, %v962
        %v964 = vpop.f32.mrf.mxu0
        %965 = vdwg.mxu0
        %v966 = vsel %vm721, %v963, -1e+30
        %v967 = vsel %vm726, %v966, -inf
        %968 = vmax.xlane.f32.xlu0 %v967
        %v969 = vpop.xlane.xlu0 %968
        %v970 = vsub.f32 %v966, %v969
        %v971 = vmul.f32 %v970, 1.442695
        %v972 = vpow.pop %v971
        %v973 = vsel %vm726, %v972, 0.0
        %974 = vadd.xlane.f32.xlu0 %v973
        %v975 = vpop.xlane.xlu0 %974
        %v976 = vrcp.pop %v975
        %v977 = vmul.f32 %v972, %v976
        %979 = vrot.lane.b32.xlu0 %v714, 120
        %v980 = vpop.permute.xlu0 %979
        %v983 = vsel %vm726, %v977, 0
        %985 = vmatprep.subr.mxu0 0.0
        %986 = vmatpush1.msra.mxu0 0.0
        %987 = vmatprep.subr.mxu0 0.0
        %988 = vmatpush1.msra.mxu0 0.0
        %989 = vmatprep.subr.mxu0 0.0
        %990 = vmatpush1.msra.mxu0 0.0
        %991 = vmatprep.subr.mxu0 0.0
        %992 = vmatpush1.msra.mxu0 0.0
        %993 = vmatprep.subr.mxu0 0.0
        %994 = vmatpush1.msra.mxu0 0.0
        %995 = vmatprep.subr.mxu0 0.0
        %996 = vmatpush1.msra.mxu0 0.0
        %997 = vmatprep.subr.mxu0 0.0
        %998 = vmatpush1.msra.mxu0 0.0
        %999 = vmatprep.subr.mxu0 0.0
        %1000 = vmatpush1.msra.mxu0 0.0
        %1001 = vmatprep.subr.mxu0 0.0
        %1002 = vmatpush1.msra.mxu0 0.0
        %1003 = vmatprep.subr.mxu0 0.0
        %1004 = vmatpush1.msra.mxu0 0.0
        %1005 = vmatprep.subr.mxu0 0.0
        %1006 = vmatpush1.msra.mxu0 0.0
        %1007 = vmatprep.subr.mxu0 0.0
        %1008 = vmatpush1.msra.mxu0 0.0
        %1009 = vmatprep.subr.mxu0 0.0
        %1010 = vmatpush1.msra.mxu0 0.0
        %1011 = vmatprep.subr.mxu0 0.0
        %1012 = vmatpush1.msra.mxu0 0.0
        %1013 = vmatprep.subr.mxu0 0.0
        %1014 = vmatpush1.msra.mxu0 0.0
        %1015 = vmatprep.subr.mxu0 0.0
        %1016 = vmatpush1.msra.mxu0 %v980
        %1017 = vmatprep.subr.mxu0 0.0
        %1018 = vmatpush2.msra.mxu0 0.0
        %1019 = vmatprep.subr.mxu0 0.0
        %1020 = vmatpush2.msra.mxu0 0.0
        %1021 = vmatprep.subr.mxu0 0.0
        %1022 = vmatpush2.msra.mxu0 0.0
        %1023 = vmatprep.subr.mxu0 0.0
        %1024 = vmatpush2.msra.mxu0 0.0
        %1025 = vmatprep.subr.mxu0 0.0
        %1026 = vmatpush2.msra.mxu0 0.0
        %1027 = vmatprep.subr.mxu0 0.0
        %1028 = vmatpush2.msra.mxu0 0.0
        %1029 = vmatprep.subr.mxu0 0.0
        %1030 = vmatpush2.msra.mxu0 0.0
        %1031 = vmatprep.subr.mxu0 0.0
        %1032 = vmatpush2.msra.mxu0 0.0
        %1033 = vmatprep.subr.mxu0 0.0
        %1034 = vmatpush2.msra.mxu0 0.0
        %1035 = vmatprep.subr.mxu0 0.0
        %1036 = vmatpush2.msra.mxu0 0.0
        %1037 = vmatprep.subr.mxu0 0.0
        %1038 = vmatpush2.msra.mxu0 0.0
        %1039 = vmatprep.subr.mxu0 0.0
        %1040 = vmatpush2.msra.mxu0 0.0
        %1041 = vmatprep.subr.mxu0 0.0
        %1042 = vmatpush2.msra.mxu0 0.0
        %1043 = vmatprep.subr.mxu0 0.0
        %1044 = vmatpush2.msra.mxu0 0.0
        %1045 = vmatprep.subr.mxu0 0.0
        %1046 = vmatpush2.msra.mxu0 0.0
        %1047 = vmatprep.subr.mxu0 0.0
        %1048 = vmatpush2.msra.mxu0 0.0
        %1049 = vmatprep.mubr.f32.mxu0 0.0
        %1050 = vmatmul.mubr.f32.gmra.mxu0 %v983
        %v1051 = vpop.f32.mrf.mxu0
        %v1052 = vadd.f32 0.0, %v1051
        %v1053 = vpop.f32.mrf.mxu0
        %1054 = vdwg.mxu0
        %1059 = vrot.lane.b32.xlu0 %v722, 120
        %v1060 = vpop.permute.xlu0 %1059
        %1061 = vrot.lane.b32.xlu0 %v723, 120
        %v1062 = vpop.permute.xlu0 %1061
        %1063 = vrot.lane.b32.xlu0 %v724, 120
        %v1064 = vpop.permute.xlu0 %1063
        %1065 = vrot.lane.b32.xlu0 %v725, 120
        %v1066 = vpop.permute.xlu0 %1065
        %v1068 = vsel %vm726, %v1052, 0
        %v1070 = vsel %vm726, %v1060, 0
        %v1072 = vsel %vm726, %v1062, 0
        %v1074 = vsel %vm726, %v1064, 0
        %v1076 = vsel %vm726, %v1066, 0
        %1078 = vmatprep.subr.mxu0 0.0
        %1079 = vmatpush1.xpose.msra.mxu0 0.0
        %1080 = vmatprep.subr.mxu0 0.0
        %1081 = vmatpush1.xpose.msra.mxu0 0.0
        %1082 = vmatprep.subr.mxu0 0.0
        %1083 = vmatpush1.xpose.msra.mxu0 0.0
        %1084 = vmatprep.subr.mxu0 0.0
        %1085 = vmatpush1.xpose.msra.mxu0 0.0
        %1086 = vmatprep.subr.mxu0 0.0
        %1087 = vmatpush1.xpose.msra.mxu0 0.0
        %1088 = vmatprep.subr.mxu0 0.0
        %1089 = vmatpush1.xpose.msra.mxu0 0.0
        %1090 = vmatprep.subr.mxu0 0.0
        %1091 = vmatpush1.xpose.msra.mxu0 0.0
        %1092 = vmatprep.subr.mxu0 0.0
        %1093 = vmatpush1.xpose.msra.mxu0 0.0
        %1094 = vmatprep.subr.mxu0 0.0
        %1095 = vmatpush1.xpose.msra.mxu0 0.0
        %1096 = vmatprep.subr.mxu0 0.0
        %1097 = vmatpush1.xpose.msra.mxu0 0.0
        %1098 = vmatprep.subr.mxu0 0.0
        %1099 = vmatpush1.xpose.msra.mxu0 0.0
        %1100 = vmatprep.subr.mxu0 0.0
        %1101 = vmatpush1.xpose.msra.mxu0 0.0
        %1102 = vmatprep.subr.mxu0 0.0
        %1103 = vmatpush1.xpose.msra.mxu0 %v1076
        %1104 = vmatprep.subr.mxu0 0.0
        %1105 = vmatpush1.xpose.msra.mxu0 %v1074
        %1106 = vmatprep.subr.mxu0 0.0
        %1107 = vmatpush1.xpose.msra.mxu0 %v1072
        %1108 = vmatprep.subr.mxu0 0.0
        %1109 = vmatpush1.xpose.msra.mxu0 %v1070
        %1110 = vmatprep.subr.mxu0 0.0
        %1111 = vmatpush2.xpose.msra.mxu0 0.0
        %1112 = vmatprep.subr.mxu0 0.0
        %1113 = vmatpush2.xpose.msra.mxu0 0.0
        %1114 = vmatprep.subr.mxu0 0.0
        %1115 = vmatpush2.xpose.msra.mxu0 0.0
        %1116 = vmatprep.subr.mxu0 0.0
        %1117 = vmatpush2.xpose.msra.mxu0 0.0
        %1118 = vmatprep.subr.mxu0 0.0
        %1119 = vmatpush2.xpose.msra.mxu0 0.0
        %1120 = vmatprep.subr.mxu0 0.0
        %1121 = vmatpush2.xpose.msra.mxu0 0.0
        %1122 = vmatprep.subr.mxu0 0.0
        %1123 = vmatpush2.xpose.msra.mxu0 0.0
        %1124 = vmatprep.subr.mxu0 0.0
        %1125 = vmatpush2.xpose.msra.mxu0 0.0
        %1126 = vmatprep.subr.mxu0 0.0
        %1127 = vmatpush2.xpose.msra.mxu0 0.0
        %1128 = vmatprep.subr.mxu0 0.0
        %1129 = vmatpush2.xpose.msra.mxu0 0.0
        %1130 = vmatprep.subr.mxu0 0.0
        %1131 = vmatpush2.xpose.msra.mxu0 0.0
        %1132 = vmatprep.subr.mxu0 0.0
        %1133 = vmatpush2.xpose.msra.mxu0 0.0
        %1134 = vmatprep.subr.mxu0 0.0
        %1135 = vmatpush2.xpose.msra.mxu0 0.0
        %1136 = vmatprep.subr.mxu0 0.0
        %1137 = vmatpush2.xpose.msra.mxu0 0.0
        %1138 = vmatprep.subr.mxu0 0.0
        %1139 = vmatpush2.xpose.msra.mxu0 0.0
        %1140 = vmatprep.subr.mxu0 0.0
        %1141 = vmatpush2.xpose.msra.mxu0 0.0
        %1142 = vmatprep.mubr.f32.mxu0 0.0
        %1143 = vmatmul.mubr.f32.gmra.mxu0 %v1068
        %v1144 = vpop.f32.mrf.mxu0
        %v1145 = vadd.f32 0.0, %v1144
        %v1146 = vpop.f32.mrf.mxu0
        %1147 = vdwg.mxu0
        %v1149 = vsel %vm726, %v885, 0
        %v1151 = vsel %vm726, %v722, 0
        %v1153 = vsel %vm726, %v723, 0
        %v1155 = vsel %vm726, %v724, 0
        %v1157 = vsel %vm726, %v725, 0
        %1159 = vmatprep.subr.mxu0 0.0
        %1160 = vmatpush1.xpose.msra.mxu0 0.0
        %1161 = vmatprep.subr.mxu0 0.0
        %1162 = vmatpush1.xpose.msra.mxu0 0.0
        %1163 = vmatprep.subr.mxu0 0.0
        %1164 = vmatpush1.xpose.msra.mxu0 0.0
        %1165 = vmatprep.subr.mxu0 0.0
        %1166 = vmatpush1.xpose.msra.mxu0 0.0
        %1167 = vmatprep.subr.mxu0 0.0
        %1168 = vmatpush1.xpose.msra.mxu0 0.0
        %1169 = vmatprep.subr.mxu0 0.0
        %1170 = vmatpush1.xpose.msra.mxu0 0.0
        %1171 = vmatprep.subr.mxu0 0.0
        %1172 = vmatpush1.xpose.msra.mxu0 0.0
        %1173 = vmatprep.subr.mxu0 0.0
        %1174 = vmatpush1.xpose.msra.mxu0 0.0
        %1175 = vmatprep.subr.mxu0 0.0
        %1176 = vmatpush1.xpose.msra.mxu0 0.0
        %1177 = vmatprep.subr.mxu0 0.0
        %1178 = vmatpush1.xpose.msra.mxu0 0.0
        %1179 = vmatprep.subr.mxu0 0.0
        %1180 = vmatpush1.xpose.msra.mxu0 0.0
        %1181 = vmatprep.subr.mxu0 0.0
        %1182 = vmatpush1.xpose.msra.mxu0 0.0
        %1183 = vmatprep.subr.mxu0 0.0
        %1184 = vmatpush1.xpose.msra.mxu0 %v1157
        %1185 = vmatprep.subr.mxu0 0.0
        %1186 = vmatpush1.xpose.msra.mxu0 %v1155
        %1187 = vmatprep.subr.mxu0 0.0
        %1188 = vmatpush1.xpose.msra.mxu0 %v1153
        %1189 = vmatprep.subr.mxu0 0.0
        %1190 = vmatpush1.xpose.msra.mxu0 %v1151
        %1191 = vmatprep.subr.mxu0 0.0
        %1192 = vmatpush2.xpose.msra.mxu0 0.0
        %1193 = vmatprep.subr.mxu0 0.0
        %1194 = vmatpush2.xpose.msra.mxu0 0.0
        %1195 = vmatprep.subr.mxu0 0.0
        %1196 = vmatpush2.xpose.msra.mxu0 0.0
        %1197 = vmatprep.subr.mxu0 0.0
        %1198 = vmatpush2.xpose.msra.mxu0 0.0
        %1199 = vmatprep.subr.mxu0 0.0
        %1200 = vmatpush2.xpose.msra.mxu0 0.0
        %1201 = vmatprep.subr.mxu0 0.0
        %1202 = vmatpush2.xpose.msra.mxu0 0.0
        %1203 = vmatprep.subr.mxu0 0.0
        %1204 = vmatpush2.xpose.msra.mxu0 0.0
        %1205 = vmatprep.subr.mxu0 0.0
        %1206 = vmatpush2.xpose.msra.mxu0 0.0
        %1207 = vmatprep.subr.mxu0 0.0
        %1208 = vmatpush2.xpose.msra.mxu0 0.0
        %1209 = vmatprep.subr.mxu0 0.0
        %1210 = vmatpush2.xpose.msra.mxu0 0.0
        %1211 = vmatprep.subr.mxu0 0.0
        %1212 = vmatpush2.xpose.msra.mxu0 0.0
        %1213 = vmatprep.subr.mxu0 0.0
        %1214 = vmatpush2.xpose.msra.mxu0 0.0
        %1215 = vmatprep.subr.mxu0 0.0
        %1216 = vmatpush2.xpose.msra.mxu0 0.0
        %1217 = vmatprep.subr.mxu0 0.0
        %1218 = vmatpush2.xpose.msra.mxu0 0.0
        %1219 = vmatprep.subr.mxu0 0.0
        %1220 = vmatpush2.xpose.msra.mxu0 0.0
        %1221 = vmatprep.subr.mxu0 0.0
        %1222 = vmatpush2.xpose.msra.mxu0 0.0
        %1223 = vmatprep.mubr.f32.mxu0 0.0
        %1224 = vmatmul.mubr.f32.gmra.mxu0 %v1149
        %v1225 = vpop.f32.mrf.mxu0
        %v1226 = vadd.f32 %v1145, %v1225
        %v1227 = vpop.f32.mrf.mxu0
        %1228 = vdwg.mxu0
        %1229 = vrot.lane.b32.xlu0 %v536, 112
        %v1230 = vpop.permute.xlu0 %1229
        %1231 = vrot.lane.b32.xlu0 %v625, 112
        %v1232 = vpop.permute.xlu0 %1231
        %v1233 = vsel %vm726, %v1230, 0
        %v1235 = vsel %vm726, %v1232, 0
        %1237 = vmatprep.subr.mxu0 0.0
        %1238 = vmatpush1.xpose.msra.mxu0 0.0
        %1239 = vmatprep.subr.mxu0 0.0
        %1240 = vmatpush1.xpose.msra.mxu0 0.0
        %1241 = vmatprep.subr.mxu0 0.0
        %1242 = vmatpush1.xpose.msra.mxu0 0.0
        %1243 = vmatprep.subr.mxu0 0.0
        %1244 = vmatpush1.xpose.msra.mxu0 0.0
        %1245 = vmatprep.subr.mxu0 0.0
        %1246 = vmatpush1.xpose.msra.mxu0 0.0
        %1247 = vmatprep.subr.mxu0 0.0
        %1248 = vmatpush1.xpose.msra.mxu0 0.0
        %1249 = vmatprep.subr.mxu0 0.0
        %1250 = vmatpush1.xpose.msra.mxu0 0.0
        %1251 = vmatprep.subr.mxu0 0.0
        %1252 = vmatpush1.xpose.msra.mxu0 0.0
        %1253 = vmatprep.subr.mxu0 0.0
        %1254 = vmatpush1.xpose.msra.mxu0 0.0
        %1255 = vmatprep.subr.mxu0 0.0
        %1256 = vmatpush1.xpose.msra.mxu0 0.0
        %1257 = vmatprep.subr.mxu0 0.0
        %1258 = vmatpush1.xpose.msra.mxu0 0.0
        %1259 = vmatprep.subr.mxu0 0.0
        %1260 = vmatpush1.xpose.msra.mxu0 0.0
        %1261 = vmatprep.subr.mxu0 0.0
        %1262 = vmatpush1.xpose.msra.mxu0 0.0
        %1263 = vmatprep.subr.mxu0 0.0
        %1264 = vmatpush1.xpose.msra.mxu0 0.0
        %1265 = vmatprep.subr.mxu0 0.0
        %1266 = vmatpush1.xpose.msra.mxu0 0.0
        %1267 = vmatprep.subr.mxu0 0.0
        %1268 = vmatpush1.xpose.msra.mxu0 %v1235
        %1269 = vmatprep.subr.mxu0 0.0
        %1270 = vmatpush2.xpose.msra.mxu0 0.0
        %1271 = vmatprep.subr.mxu0 0.0
        %1272 = vmatpush2.xpose.msra.mxu0 0.0
        %1273 = vmatprep.subr.mxu0 0.0
        %1274 = vmatpush2.xpose.msra.mxu0 0.0
        %1275 = vmatprep.subr.mxu0 0.0
        %1276 = vmatpush2.xpose.msra.mxu0 0.0
        %1277 = vmatprep.subr.mxu0 0.0
        %1278 = vmatpush2.xpose.msra.mxu0 0.0
        %1279 = vmatprep.subr.mxu0 0.0
        %1280 = vmatpush2.xpose.msra.mxu0 0.0
        %1281 = vmatprep.subr.mxu0 0.0
        %1282 = vmatpush2.xpose.msra.mxu0 0.0
        %1283 = vmatprep.subr.mxu0 0.0
        %1284 = vmatpush2.xpose.msra.mxu0 0.0
        %1285 = vmatprep.subr.mxu0 0.0
        %1286 = vmatpush2.xpose.msra.mxu0 0.0
        %1287 = vmatprep.subr.mxu0 0.0
        %1288 = vmatpush2.xpose.msra.mxu0 0.0
        %1289 = vmatprep.subr.mxu0 0.0
        %1290 = vmatpush2.xpose.msra.mxu0 0.0
        %1291 = vmatprep.subr.mxu0 0.0
        %1292 = vmatpush2.xpose.msra.mxu0 0.0
        %1293 = vmatprep.subr.mxu0 0.0
        %1294 = vmatpush2.xpose.msra.mxu0 0.0
        %1295 = vmatprep.subr.mxu0 0.0
        %1296 = vmatpush2.xpose.msra.mxu0 0.0
        %1297 = vmatprep.subr.mxu0 0.0
        %1298 = vmatpush2.xpose.msra.mxu0 0.0
        %1299 = vmatprep.subr.mxu0 0.0
        %1300 = vmatpush2.xpose.msra.mxu0 0.0
        %1301 = vmatprep.mubr.f32.mxu0 0.0
        %1302 = vmatmul.mubr.f32.gmra.mxu0 %v1233
        %v1303 = vpop.f32.mrf.mxu0
        %v1304 = vadd.f32 0.0, %v1303
        %v1305 = vpop.f32.mrf.mxu0
        %1306 = vdwg.mxu0
        %v1307 = vsel %vm721, %v1304, -1e+30
        %v1308 = vsel %vm726, %v1307, -inf
        %1309 = vmax.xlane.f32.xlu0 %v1308
        %v1310 = vpop.xlane.xlu0 %1309
        %v1311 = vsub.f32 %v1307, %v1310
        %v1312 = vmul.f32 %v1311, 1.442695
        %v1313 = vpow.pop %v1312
        %v1314 = vsel %vm726, %v1313, 0.0
        %1315 = vadd.xlane.f32.xlu0 %v1314
        %v1316 = vpop.xlane.xlu0 %1315
        %v1317 = vrcp.pop %v1316
        %v1318 = vmul.f32 %v1313, %v1317
        %1319 = vrot.lane.b32.xlu0 %v714, 112
        %v1320 = vpop.permute.xlu0 %1319
        %v1323 = vsel %vm726, %v1318, 0
        %1325 = vmatprep.subr.mxu0 0.0
        %1326 = vmatpush1.msra.mxu0 0.0
        %1327 = vmatprep.subr.mxu0 0.0
        %1328 = vmatpush1.msra.mxu0 0.0
        %1329 = vmatprep.subr.mxu0 0.0
        %1330 = vmatpush1.msra.mxu0 0.0
        %1331 = vmatprep.subr.mxu0 0.0
        %1332 = vmatpush1.msra.mxu0 0.0
        %1333 = vmatprep.subr.mxu0 0.0
        %1334 = vmatpush1.msra.mxu0 0.0
        %1335 = vmatprep.subr.mxu0 0.0
        %1336 = vmatpush1.msra.mxu0 0.0
        %1337 = vmatprep.subr.mxu0 0.0
        %1338 = vmatpush1.msra.mxu0 0.0
        %1339 = vmatprep.subr.mxu0 0.0
        %1340 = vmatpush1.msra.mxu0 0.0
        %1341 = vmatprep.subr.mxu0 0.0
        %1342 = vmatpush1.msra.mxu0 0.0
        %1343 = vmatprep.subr.mxu0 0.0
        %1344 = vmatpush1.msra.mxu0 0.0
        %1345 = vmatprep.subr.mxu0 0.0
        %1346 = vmatpush1.msra.mxu0 0.0
        %1347 = vmatprep.subr.mxu0 0.0
        %1348 = vmatpush1.msra.mxu0 0.0
        %1349 = vmatprep.subr.mxu0 0.0
        %1350 = vmatpush1.msra.mxu0 0.0
        %1351 = vmatprep.subr.mxu0 0.0
        %1352 = vmatpush1.msra.mxu0 0.0
        %1353 = vmatprep.subr.mxu0 0.0
        %1354 = vmatpush1.msra.mxu0 0.0
        %1355 = vmatprep.subr.mxu0 0.0
        %1356 = vmatpush1.msra.mxu0 %v1320
        %1357 = vmatprep.subr.mxu0 0.0
        %1358 = vmatpush2.msra.mxu0 0.0
        %1359 = vmatprep.subr.mxu0 0.0
        %1360 = vmatpush2.msra.mxu0 0.0
        %1361 = vmatprep.subr.mxu0 0.0
        %1362 = vmatpush2.msra.mxu0 0.0
        %1363 = vmatprep.subr.mxu0 0.0
        %1364 = vmatpush2.msra.mxu0 0.0
        %1365 = vmatprep.subr.mxu0 0.0
        %1366 = vmatpush2.msra.mxu0 0.0
        %1367 = vmatprep.subr.mxu0 0.0
        %1368 = vmatpush2.msra.mxu0 0.0
        %1369 = vmatprep.subr.mxu0 0.0
        %1370 = vmatpush2.msra.mxu0 0.0
        %1371 = vmatprep.subr.mxu0 0.0
        %1372 = vmatpush2.msra.mxu0 0.0
        %1373 = vmatprep.subr.mxu0 0.0
        %1374 = vmatpush2.msra.mxu0 0.0
        %1375 = vmatprep.subr.mxu0 0.0
        %1376 = vmatpush2.msra.mxu0 0.0
        %1377 = vmatprep.subr.mxu0 0.0
        %1378 = vmatpush2.msra.mxu0 0.0
        %1379 = vmatprep.subr.mxu0 0.0
        %1380 = vmatpush2.msra.mxu0 0.0
        %1381 = vmatprep.subr.mxu0 0.0
        %1382 = vmatpush2.msra.mxu0 0.0
        %1383 = vmatprep.subr.mxu0 0.0
        %1384 = vmatpush2.msra.mxu0 0.0
        %1385 = vmatprep.subr.mxu0 0.0
        %1386 = vmatpush2.msra.mxu0 0.0
        %1387 = vmatprep.subr.mxu0 0.0
        %1388 = vmatpush2.msra.mxu0 0.0
        %1389 = vmatprep.mubr.f32.mxu0 0.0
        %1390 = vmatmul.mubr.f32.gmra.mxu0 %v1323
        %v1391 = vpop.f32.mrf.mxu0
        %v1392 = vadd.f32 0.0, %v1391
        %v1393 = vpop.f32.mrf.mxu0
        %1394 = vdwg.mxu0
        %1395 = vrot.lane.b32.xlu0 %v722, 112
        %v1396 = vpop.permute.xlu0 %1395
        %1397 = vrot.lane.b32.xlu0 %v723, 112
        %v1398 = vpop.permute.xlu0 %1397
        %1399 = vrot.lane.b32.xlu0 %v724, 112
        %v1400 = vpop.permute.xlu0 %1399
        %1401 = vrot.lane.b32.xlu0 %v725, 112
        %v1402 = vpop.permute.xlu0 %1401
        %v1404 = vsel %vm726, %v1392, 0
        %v1406 = vsel %vm726, %v1396, 0
        %v1408 = vsel %vm726, %v1398, 0
        %v1410 = vsel %vm726, %v1400, 0
        %v1412 = vsel %vm726, %v1402, 0
        %1414 = vmatprep.subr.mxu0 0.0
        %1415 = vmatpush1.xpose.msra.mxu0 0.0
        %1416 = vmatprep.subr.mxu0 0.0
        %1417 = vmatpush1.xpose.msra.mxu0 0.0
        %1418 = vmatprep.subr.mxu0 0.0
        %1419 = vmatpush1.xpose.msra.mxu0 0.0
        %1420 = vmatprep.subr.mxu0 0.0
        %1421 = vmatpush1.xpose.msra.mxu0 0.0
        %1422 = vmatprep.subr.mxu0 0.0
        %1423 = vmatpush1.xpose.msra.mxu0 0.0
        %1424 = vmatprep.subr.mxu0 0.0
        %1425 = vmatpush1.xpose.msra.mxu0 0.0
        %1426 = vmatprep.subr.mxu0 0.0
        %1427 = vmatpush1.xpose.msra.mxu0 0.0
        %1428 = vmatprep.subr.mxu0 0.0
        %1429 = vmatpush1.xpose.msra.mxu0 0.0
        %1430 = vmatprep.subr.mxu0 0.0
        %1431 = vmatpush1.xpose.msra.mxu0 0.0
        %1432 = vmatprep.subr.mxu0 0.0
        %1433 = vmatpush1.xpose.msra.mxu0 0.0
        %1434 = vmatprep.subr.mxu0 0.0
        %1435 = vmatpush1.xpose.msra.mxu0 0.0
        %1436 = vmatprep.subr.mxu0 0.0
        %1437 = vmatpush1.xpose.msra.mxu0 0.0
        %1438 = vmatprep.subr.mxu0 0.0
        %1439 = vmatpush1.xpose.msra.mxu0 %v1412
        %1440 = vmatprep.subr.mxu0 0.0
        %1441 = vmatpush1.xpose.msra.mxu0 %v1410
        %1442 = vmatprep.subr.mxu0 0.0
        %1443 = vmatpush1.xpose.msra.mxu0 %v1408
        %1444 = vmatprep.subr.mxu0 0.0
        %1445 = vmatpush1.xpose.msra.mxu0 %v1406
        %1446 = vmatprep.subr.mxu0 0.0
        %1447 = vmatpush2.xpose.msra.mxu0 0.0
        %1448 = vmatprep.subr.mxu0 0.0
        %1449 = vmatpush2.xpose.msra.mxu0 0.0
        %1450 = vmatprep.subr.mxu0 0.0
        %1451 = vmatpush2.xpose.msra.mxu0 0.0
        %1452 = vmatprep.subr.mxu0 0.0
        %1453 = vmatpush2.xpose.msra.mxu0 0.0
        %1454 = vmatprep.subr.mxu0 0.0
        %1455 = vmatpush2.xpose.msra.mxu0 0.0
        %1456 = vmatprep.subr.mxu0 0.0
        %1457 = vmatpush2.xpose.msra.mxu0 0.0
        %1458 = vmatprep.subr.mxu0 0.0
        %1459 = vmatpush2.xpose.msra.mxu0 0.0
        %1460 = vmatprep.subr.mxu0 0.0
        %1461 = vmatpush2.xpose.msra.mxu0 0.0
        %1462 = vmatprep.subr.mxu0 0.0
        %1463 = vmatpush2.xpose.msra.mxu0 0.0
        %1464 = vmatprep.subr.mxu0 0.0
        %1465 = vmatpush2.xpose.msra.mxu0 0.0
        %1466 = vmatprep.subr.mxu0 0.0
        %1467 = vmatpush2.xpose.msra.mxu0 0.0
        %1468 = vmatprep.subr.mxu0 0.0
        %1469 = vmatpush2.xpose.msra.mxu0 0.0
        %1470 = vmatprep.subr.mxu0 0.0
        %1471 = vmatpush2.xpose.msra.mxu0 0.0
        %1472 = vmatprep.subr.mxu0 0.0
        %1473 = vmatpush2.xpose.msra.mxu0 0.0
        %1474 = vmatprep.subr.mxu0 0.0
        %1475 = vmatpush2.xpose.msra.mxu0 0.0
        %1476 = vmatprep.subr.mxu0 0.0
        %1477 = vmatpush2.xpose.msra.mxu0 0.0
        %1478 = vmatprep.mubr.f32.mxu0 0.0
        %1479 = vmatmul.mubr.f32.gmra.mxu0 %v1404
        %v1480 = vpop.f32.mrf.mxu0
        %v1481 = vadd.f32 0.0, %v1480
        %v1482 = vpop.f32.mrf.mxu0
        %1483 = vdwg.mxu0
        %v1484 = vadd.f32 %v1226, %v1481
        %1485 = vrot.lane.b32.xlu0 %v536, 104
        %v1486 = vpop.permute.xlu0 %1485
        %1487 = vrot.lane.b32.xlu0 %v625, 104
        %v1488 = vpop.permute.xlu0 %1487
        %v1489 = vsel %vm726, %v1486, 0
        %v1491 = vsel %vm726, %v1488, 0
        %1493 = vmatprep.subr.mxu0 0.0
        %1494 = vmatpush1.xpose.msra.mxu0 0.0
        %1495 = vmatprep.subr.mxu0 0.0
        %1496 = vmatpush1.xpose.msra.mxu0 0.0
        %1497 = vmatprep.subr.mxu0 0.0
        %1498 = vmatpush1.xpose.msra.mxu0 0.0
        %1499 = vmatprep.subr.mxu0 0.0
        %1500 = vmatpush1.xpose.msra.mxu0 0.0
        %1501 = vmatprep.subr.mxu0 0.0
        %1502 = vmatpush1.xpose.msra.mxu0 0.0
        %1503 = vmatprep.subr.mxu0 0.0
        %1504 = vmatpush1.xpose.msra.mxu0 0.0
        %1505 = vmatprep.subr.mxu0 0.0
        %1506 = vmatpush1.xpose.msra.mxu0 0.0
        %1507 = vmatprep.subr.mxu0 0.0
        %1508 = vmatpush1.xpose.msra.mxu0 0.0
        %1509 = vmatprep.subr.mxu0 0.0
        %1510 = vmatpush1.xpose.msra.mxu0 0.0
        %1511 = vmatprep.subr.mxu0 0.0
        %1512 = vmatpush1.xpose.msra.mxu0 0.0
        %1513 = vmatprep.subr.mxu0 0.0
        %1514 = vmatpush1.xpose.msra.mxu0 0.0
        %1515 = vmatprep.subr.mxu0 0.0
        %1516 = vmatpush1.xpose.msra.mxu0 0.0
        %1517 = vmatprep.subr.mxu0 0.0
        %1518 = vmatpush1.xpose.msra.mxu0 0.0
        %1519 = vmatprep.subr.mxu0 0.0
        %1520 = vmatpush1.xpose.msra.mxu0 0.0
        %1521 = vmatprep.subr.mxu0 0.0
        %1522 = vmatpush1.xpose.msra.mxu0 0.0
        %1523 = vmatprep.subr.mxu0 0.0
        %1524 = vmatpush1.xpose.msra.mxu0 %v1491
        %1525 = vmatprep.subr.mxu0 0.0
        %1526 = vmatpush2.xpose.msra.mxu0 0.0
        %1527 = vmatprep.subr.mxu0 0.0
        %1528 = vmatpush2.xpose.msra.mxu0 0.0
        %1529 = vmatprep.subr.mxu0 0.0
        %1530 = vmatpush2.xpose.msra.mxu0 0.0
        %1531 = vmatprep.subr.mxu0 0.0
        %1532 = vmatpush2.xpose.msra.mxu0 0.0
        %1533 = vmatprep.subr.mxu0 0.0
        %1534 = vmatpush2.xpose.msra.mxu0 0.0
        %1535 = vmatprep.subr.mxu0 0.0
        %1536 = vmatpush2.xpose.msra.mxu0 0.0
        %1537 = vmatprep.subr.mxu0 0.0
        %1538 = vmatpush2.xpose.msra.mxu0 0.0
        %1539 = vmatprep.subr.mxu0 0.0
        %1540 = vmatpush2.xpose.msra.mxu0 0.0
        %1541 = vmatprep.subr.mxu0 0.0
        %1542 = vmatpush2.xpose.msra.mxu0 0.0
        %1543 = vmatprep.subr.mxu0 0.0
        %1544 = vmatpush2.xpose.msra.mxu0 0.0
        %1545 = vmatprep.subr.mxu0 0.0
        %1546 = vmatpush2.xpose.msra.mxu0 0.0
        %1547 = vmatprep.subr.mxu0 0.0
        %1548 = vmatpush2.xpose.msra.mxu0 0.0
        %1549 = vmatprep.subr.mxu0 0.0
        %1550 = vmatpush2.xpose.msra.mxu0 0.0
        %1551 = vmatprep.subr.mxu0 0.0
        %1552 = vmatpush2.xpose.msra.mxu0 0.0
        %1553 = vmatprep.subr.mxu0 0.0
        %1554 = vmatpush2.xpose.msra.mxu0 0.0
        %1555 = vmatprep.subr.mxu0 0.0
        %1556 = vmatpush2.xpose.msra.mxu0 0.0
        %1557 = vmatprep.mubr.f32.mxu0 0.0
        %1558 = vmatmul.mubr.f32.gmra.mxu0 %v1489
        %v1559 = vpop.f32.mrf.mxu0
        %v1560 = vadd.f32 0.0, %v1559
        %v1561 = vpop.f32.mrf.mxu0
        %1562 = vdwg.mxu0
        %v1563 = vsel %vm721, %v1560, -1e+30
        %v1564 = vsel %vm726, %v1563, -inf
        %1565 = vmax.xlane.f32.xlu0 %v1564
        %v1566 = vpop.xlane.xlu0 %1565
        %v1567 = vsub.f32 %v1563, %v1566
        %v1568 = vmul.f32 %v1567, 1.442695
        %v1569 = vpow.pop %v1568
        %v1570 = vsel %vm726, %v1569, 0.0
        %1571 = vadd.xlane.f32.xlu0 %v1570
        %v1572 = vpop.xlane.xlu0 %1571
        %v1573 = vrcp.pop %v1572
        %v1574 = vmul.f32 %v1569, %v1573
        %1575 = vrot.lane.b32.xlu0 %v714, 104
        %v1576 = vpop.permute.xlu0 %1575
        %v1579 = vsel %vm726, %v1574, 0
        %1581 = vmatprep.subr.mxu0 0.0
        %1582 = vmatpush1.msra.mxu0 0.0
        %1583 = vmatprep.subr.mxu0 0.0
        %1584 = vmatpush1.msra.mxu0 0.0
        %1585 = vmatprep.subr.mxu0 0.0
        %1586 = vmatpush1.msra.mxu0 0.0
        %1587 = vmatprep.subr.mxu0 0.0
        %1588 = vmatpush1.msra.mxu0 0.0
        %1589 = vmatprep.subr.mxu0 0.0
        %1590 = vmatpush1.msra.mxu0 0.0
        %1591 = vmatprep.subr.mxu0 0.0
        %1592 = vmatpush1.msra.mxu0 0.0
        %1593 = vmatprep.subr.mxu0 0.0
        %1594 = vmatpush1.msra.mxu0 0.0
        %1595 = vmatprep.subr.mxu0 0.0
        %1596 = vmatpush1.msra.mxu0 0.0
        %1597 = vmatprep.subr.mxu0 0.0
        %1598 = vmatpush1.msra.mxu0 0.0
        %1599 = vmatprep.subr.mxu0 0.0
        %1600 = vmatpush1.msra.mxu0 0.0
        %1601 = vmatprep.subr.mxu0 0.0
        %1602 = vmatpush1.msra.mxu0 0.0
        %1603 = vmatprep.subr.mxu0 0.0
        %1604 = vmatpush1.msra.mxu0 0.0
        %1605 = vmatprep.subr.mxu0 0.0
        %1606 = vmatpush1.msra.mxu0 0.0
        %1607 = vmatprep.subr.mxu0 0.0
        %1608 = vmatpush1.msra.mxu0 0.0
        %1609 = vmatprep.subr.mxu0 0.0
        %1610 = vmatpush1.msra.mxu0 0.0
        %1611 = vmatprep.subr.mxu0 0.0
        %1612 = vmatpush1.msra.mxu0 %v1576
        %1613 = vmatprep.subr.mxu0 0.0
        %1614 = vmatpush2.msra.mxu0 0.0
        %1615 = vmatprep.subr.mxu0 0.0
        %1616 = vmatpush2.msra.mxu0 0.0
        %1617 = vmatprep.subr.mxu0 0.0
        %1618 = vmatpush2.msra.mxu0 0.0
        %1619 = vmatprep.subr.mxu0 0.0
        %1620 = vmatpush2.msra.mxu0 0.0
        %1621 = vmatprep.subr.mxu0 0.0
        %1622 = vmatpush2.msra.mxu0 0.0
        %1623 = vmatprep.subr.mxu0 0.0
        %1624 = vmatpush2.msra.mxu0 0.0
        %1625 = vmatprep.subr.mxu0 0.0
        %1626 = vmatpush2.msra.mxu0 0.0
        %1627 = vmatprep.subr.mxu0 0.0
        %1628 = vmatpush2.msra.mxu0 0.0
        %1629 = vmatprep.subr.mxu0 0.0
        %1630 = vmatpush2.msra.mxu0 0.0
        %1631 = vmatprep.subr.mxu0 0.0
        %1632 = vmatpush2.msra.mxu0 0.0
        %1633 = vmatprep.subr.mxu0 0.0
        %1634 = vmatpush2.msra.mxu0 0.0
        %1635 = vmatprep.subr.mxu0 0.0
        %1636 = vmatpush2.msra.mxu0 0.0
        %1637 = vmatprep.subr.mxu0 0.0
        %1638 = vmatpush2.msra.mxu0 0.0
        %1639 = vmatprep.subr.mxu0 0.0
        %1640 = vmatpush2.msra.mxu0 0.0
        %1641 = vmatprep.subr.mxu0 0.0
        %1642 = vmatpush2.msra.mxu0 0.0
        %1643 = vmatprep.subr.mxu0 0.0
        %1644 = vmatpush2.msra.mxu0 0.0
        %1645 = vmatprep.mubr.f32.mxu0 0.0
        %1646 = vmatmul.mubr.f32.gmra.mxu0 %v1579
        %v1647 = vpop.f32.mrf.mxu0
        %v1648 = vadd.f32 0.0, %v1647
        %v1649 = vpop.f32.mrf.mxu0
        %1650 = vdwg.mxu0
        %1651 = vrot.lane.b32.xlu0 %v722, 104
        %v1652 = vpop.permute.xlu0 %1651
        %1653 = vrot.lane.b32.xlu0 %v723, 104
        %v1654 = vpop.permute.xlu0 %1653
        %1655 = vrot.lane.b32.xlu0 %v724, 104
        %v1656 = vpop.permute.xlu0 %1655
        %1657 = vrot.lane.b32.xlu0 %v725, 104
        %v1658 = vpop.permute.xlu0 %1657
        %v1660 = vsel %vm726, %v1648, 0
        %v1662 = vsel %vm726, %v1652, 0
        %v1664 = vsel %vm726, %v1654, 0
        %v1666 = vsel %vm726, %v1656, 0
        %v1668 = vsel %vm726, %v1658, 0
        %1670 = vmatprep.subr.mxu0 0.0
        %1671 = vmatpush1.xpose.msra.mxu0 0.0
        %1672 = vmatprep.subr.mxu0 0.0
        %1673 = vmatpush1.xpose.msra.mxu0 0.0
        %1674 = vmatprep.subr.mxu0 0.0
        %1675 = vmatpush1.xpose.msra.mxu0 0.0
        %1676 = vmatprep.subr.mxu0 0.0
        %1677 = vmatpush1.xpose.msra.mxu0 0.0
        %1678 = vmatprep.subr.mxu0 0.0
        %1679 = vmatpush1.xpose.msra.mxu0 0.0
        %1680 = vmatprep.subr.mxu0 0.0
        %1681 = vmatpush1.xpose.msra.mxu0 0.0
        %1682 = vmatprep.subr.mxu0 0.0
        %1683 = vmatpush1.xpose.msra.mxu0 0.0
        %1684 = vmatprep.subr.mxu0 0.0
        %1685 = vmatpush1.xpose.msra.mxu0 0.0
        %1686 = vmatprep.subr.mxu0 0.0
        %1687 = vmatpush1.xpose.msra.mxu0 0.0
        %1688 = vmatprep.subr.mxu0 0.0
        %1689 = vmatpush1.xpose.msra.mxu0 0.0
        %1690 = vmatprep.subr.mxu0 0.0
        %1691 = vmatpush1.xpose.msra.mxu0 0.0
        %1692 = vmatprep.subr.mxu0 0.0
        %1693 = vmatpush1.xpose.msra.mxu0 0.0
        %1694 = vmatprep.subr.mxu0 0.0
        %1695 = vmatpush1.xpose.msra.mxu0 %v1668
        %1696 = vmatprep.subr.mxu0 0.0
        %1697 = vmatpush1.xpose.msra.mxu0 %v1666
        %1698 = vmatprep.subr.mxu0 0.0
        %1699 = vmatpush1.xpose.msra.mxu0 %v1664
        %1700 = vmatprep.subr.mxu0 0.0
        %1701 = vmatpush1.xpose.msra.mxu0 %v1662
        %1702 = vmatprep.subr.mxu0 0.0
        %1703 = vmatpush2.xpose.msra.mxu0 0.0
        %1704 = vmatprep.subr.mxu0 0.0
        %1705 = vmatpush2.xpose.msra.mxu0 0.0
        %1706 = vmatprep.subr.mxu0 0.0
        %1707 = vmatpush2.xpose.msra.mxu0 0.0
        %1708 = vmatprep.subr.mxu0 0.0
        %1709 = vmatpush2.xpose.msra.mxu0 0.0
        %1710 = vmatprep.subr.mxu0 0.0
        %1711 = vmatpush2.xpose.msra.mxu0 0.0
        %1712 = vmatprep.subr.mxu0 0.0
        %1713 = vmatpush2.xpose.msra.mxu0 0.0
        %1714 = vmatprep.subr.mxu0 0.0
        %1715 = vmatpush2.xpose.msra.mxu0 0.0
        %1716 = vmatprep.subr.mxu0 0.0
        %1717 = vmatpush2.xpose.msra.mxu0 0.0
        %1718 = vmatprep.subr.mxu0 0.0
        %1719 = vmatpush2.xpose.msra.mxu0 0.0
        %1720 = vmatprep.subr.mxu0 0.0
        %1721 = vmatpush2.xpose.msra.mxu0 0.0
        %1722 = vmatprep.subr.mxu0 0.0
        %1723 = vmatpush2.xpose.msra.mxu0 0.0
        %1724 = vmatprep.subr.mxu0 0.0
        %1725 = vmatpush2.xpose.msra.mxu0 0.0
        %1726 = vmatprep.subr.mxu0 0.0
        %1727 = vmatpush2.xpose.msra.mxu0 0.0
        %1728 = vmatprep.subr.mxu0 0.0
        %1729 = vmatpush2.xpose.msra.mxu0 0.0
        %1730 = vmatprep.subr.mxu0 0.0
        %1731 = vmatpush2.xpose.msra.mxu0 0.0
        %1732 = vmatprep.subr.mxu0 0.0
        %1733 = vmatpush2.xpose.msra.mxu0 0.0
        %1734 = vmatprep.mubr.f32.mxu0 0.0
        %1735 = vmatmul.mubr.f32.gmra.mxu0 %v1660
        %v1736 = vpop.f32.mrf.mxu0
        %v1737 = vadd.f32 0.0, %v1736
        %v1738 = vpop.f32.mrf.mxu0
        %1739 = vdwg.mxu0
        %v1740 = vadd.f32 %v1484, %v1737
        %1741 = vst.msk [vmem:[%s445] sm:$0xff] %vm453, %v1740
        %s1742 = sand.u32 %s219, 1
        %s1743 = scalar_lea.sflag [#allocation4], %s1742
        %s1744 = sand.u32 %s219, 1
        %s1745 = smul.addr %s1744, 8
        %s1746 = scalar_lea.vmem [#allocation14], %s1745
        // Predicated region
        $region77: #{tpu_custom_call.1} parent=47 // pred_check
          %p1747 = pneg %p229
        $region78: #{tpu_custom_call.1} parent=47 // pred_check_branch
          %1749 = sbr.rel (%p1747) target = $region80
        $region79: #{tpu_custom_call.1} parent=47 // pred_region
          %s1751 = ssub.s32 128, 128
          %1752 = vsyncadd %s1743, %s1751
          %s1753 = sadd.s32 %s34, %s33
          %s1754 = smul.addr %s1753, 128
          %s1755 = scalar_lea.hbm %s7, %s1754
          %s1757 = sshll.u32 %s1746, 4
          %s1758 = int_to_ptr.vmem [resolvable:$true] %s1757
          %1760 = dma.vmem_to_hbm [thread:$0]  %s1758, 128, %s1755, %s1743
        $region80: #{tpu_custom_call.1} parent=47 // pred_fallthru
          _
      $region48: #{tpu_custom_call.1} parent=5 // pred_fallthru
        _
      %p1761 = scmp.le.s32.totalorder 2, %s24
      // Predicated region
      $region81: #{tpu_custom_call.1} parent=5 // pred_check
        %p1762 = pneg %p1761
      $region82: #{tpu_custom_call.1} parent=5 // pred_check_branch
        %1764 = sbr.rel (%p1762) target = $region84
      $region83: #{tpu_custom_call.1} parent=5 // pred_region
        %s1765 = ssub.s32 %s24, 2
        // Predicated region
        $region85: #{tpu_custom_call.1} parent=83 // pred_check
          %p1766 = pneg %p235
        $region86: #{tpu_custom_call.1} parent=83 // pred_check_branch
          %1768 = sbr.rel (%p1766) target = $region88
        $region87: #{tpu_custom_call.1} parent=83 // pred_region
          %s1769 = sand.u32 %s220, 1
          %s1770 = scalar_lea.sflag [#allocation4], %s1769
          %s1771 = sand.u32 %s220, 1
          %s1772 = smul.addr %s1771, 8
          %s1773 = scalar_lea.vmem [#allocation14], %s1772
          %1774 = dma.done %s1770, 128
        $region88: #{tpu_custom_call.1} parent=83 // pred_fallthru
          _
      $region84: #{tpu_custom_call.1} parent=5 // pred_fallthru
        _
    $region6: #{tpu_custom_call.1} parent=1 // loop_footer
      %s28 = sadd.s32 1, %s24
    $region7: #{tpu_custom_call.1} parent=1 // loop_footer_branch
      %23 = sbr.rel target = $region3
    $region8: #{tpu_custom_call.1} parent=1 // loop_exit
      _
    %1775 = vsyncpa [#allocation3], 1
    %s1776 = scalar_lea.sflag [#allocation3], 1
    %1777 = vsyncpa %s1776, 1
    %1778 = vsyncpa [#allocation6], 1
    %s1779 = scalar_lea.sflag [#allocation6], 1
    %1780 = vsyncpa %s1779, 1
    %1781 = vsyncpa [#allocation9], 1
    %1782 = vsyncpa [#allocation12], 1
    %1783 = vsyncpa [#allocation4], 1
    %s1784 = scalar_lea.sflag [#allocation4], 1
    %1785 = vsyncpa %s1784, 1

</llo_original>
